<compile_context>
chip_gen: v7x
topology: tpu7x:2x2x1
jax: 0.10.0
libtpu: 0.0.40
codegen_flags: <defaults>
</compile_context>

<pallas_src>
import math
from functools import partial

import numpy as np
import jax
import jax.numpy as jnp
from jax.experimental import pallas as pl
from jax.experimental.pallas import tpu as pltpu

# bf16 operands + f32 accumulation is the recommended MXU path on all current
# TPU generations; set to jnp.float32 for bit-faithful f32 matmuls.
MXU_DTYPE = jnp.bfloat16

# Physical VMEM (v5e/v6e: 128 MiB, v7x: 64 MiB).  Queried once; safe fallback.
try:
    _PHYS_VMEM = int(pltpu.get_tpu_info().vmem_capacity_bytes)
except Exception:  # pragma: no cover - conservative fallback (v7x-sized)
    _PHYS_VMEM = 64 << 20


# ----------------------------- tiling helpers ------------------------------

def _pick_tile(dim, target, align):
    """Largest divisor of `dim` that is <= target and a multiple of `align`
    (falls back to the full dim), so every block divides the array exactly."""
    if dim <= target:
        return dim
    t = (target // align) * align
    while t >= align:
        if dim % t == 0:
            return t
        t -= align
    return dim


def _nbytes(shape, dtype):
    return math.prod(shape) * np.dtype(dtype).itemsize


def _vmem_limit(*block_bytes):
    # Double-buffered blocks + headroom, capped at ~70% of physical VMEM
    # (~90 MiB on v5e/v6e with 128 MiB, ~45 MiB on v7x with 64 MiB).
    cap = int(_PHYS_VMEM * 0.7)
    need = 2 * sum(block_bytes) + (4 << 20)
    return int(min(max(need, 32 << 20), cap))


# ----------------------------- Pallas kernels ------------------------------

def _ln_linear_kernel(x_ref, g_ref, bln_ref, w_ref, b_ref, o_ref, xn_ref, *,
                      eps, quick_gelu):
    # Fused LayerNorm (fp32, matching the LayerNorm subclass) + matmul + bias
    # (+ optional QuickGELU).  LN needs the full feature row, so K is untiled.
    # The normalized row tile is computed once per row tile (j == 0) into a
    # bf16 VMEM scratch and reused for every output-column tile j.
    @pl.when(pl.program_id(1) == 0)
    def _normalize():
        x = x_ref[...].astype(jnp.float32)
        mean = jnp.mean(x, axis=-1, keepdims=True)
        var = jnp.mean(jnp.square(x - mean), axis=-1, keepdims=True)
        xn = (x - mean) * jax.lax.rsqrt(var + eps)
        xn_ref[...] = (xn * g_ref[...] + bln_ref[...]).astype(xn_ref.dtype)

    y = jnp.dot(xn_ref[...], w_ref[...], preferred_element_type=jnp.float32)
    y = y + b_ref[...]
    if quick_gelu:
        y = y * jax.nn.sigmoid(1.702 * y)          # QuickGELU (f32 elementwise)
    o_ref[...] = y.astype(o_ref.dtype)


def ln_linear(x2d, gamma, beta, w, b, *, eps=1e-5, quick_gelu=False,
              out_dtype=None):
    # x2d: (M, K) f32; w: (K, N) bf16 (already transposed & LoRA-folded); b: (N,)
    M, K = x2d.shape
    N = w.shape[1]
    out_dtype = x2d.dtype if out_dtype is None else out_dtype
    tm = _pick_tile(M, 512, 16)
    tn = _pick_tile(N, 512, 128)
    grid = (M // tm, N // tn)
    vmem = _vmem_limit(
        _nbytes((tm, K), x2d.dtype), _nbytes((K, tn), w.dtype),
        _nbytes((tm, K), MXU_DTYPE), _nbytes((tm, tn), out_dtype),
        _nbytes((2, K), jnp.float32), _nbytes((1, tn), jnp.float32))
    return pl.pallas_call(
        partial(_ln_linear_kernel, eps=eps, quick_gelu=quick_gelu),
        out_shape=jax.ShapeDtypeStruct((M, N), out_dtype),
        grid=grid,
        in_specs=[
            pl.BlockSpec((tm, K), lambda i, j: (i, 0)),   # x row tile (full K)
            pl.BlockSpec((1, K), lambda i, j: (0, 0)),    # LN gamma
            pl.BlockSpec((1, K), lambda i, j: (0, 0)),    # LN beta
            pl.BlockSpec((K, tn), lambda i, j: (0, j)),   # weight column tile
            pl.BlockSpec((1, tn), lambda i, j: (0, j)),   # bias
        ],
        out_specs=pl.BlockSpec((tm, tn), lambda i, j: (i, j)),
        scratch_shapes=[pltpu.VMEM((tm, K), MXU_DTYPE)],  # normalized rows
        compiler_params=pltpu.CompilerParams(
            # j is "arbitrary" so the normalized-row scratch written at j==0
            # is guaranteed to be reused by the same core for all j of this i.
            dimension_semantics=("parallel", "arbitrary"),
            vmem_limit_bytes=vmem),
    )(x2d, gamma.reshape(1, K), beta.reshape(1, K), w, b.reshape(1, N))


def _linear_res_kernel(x_ref, w_ref, b_ref, r_ref, o_ref, acc_ref):
    # Tiled matmul with f32 VMEM accumulator over the K grid axis, plus fused
    # bias and residual add on the final K step.  x/w arrive in bf16 already.
    k = pl.program_id(2)

    @pl.when(k == 0)
    def _init():
        acc_ref[...] = jnp.zeros_like(acc_ref)

    acc_ref[...] += jnp.dot(x_ref[...], w_ref[...],
                            preferred_element_type=jnp.float32)

    @pl.when(k == pl.num_programs(2) - 1)
    def _finalize():
        y = acc_ref[...] + b_ref[...] + r_ref[...].astype(jnp.float32)
        o_ref[...] = y.astype(o_ref.dtype)


def linear_residual(x2d, w, b, residual):
    # y = residual + x2d @ w + b    (x2d: (M,K) bf16, w: (K,N) bf16, residual f32)
    M, K = x2d.shape
    N = w.shape[1]
    tm = _pick_tile(M, 512, 16)
    tn = _pick_tile(N, 512, 128)
    tk = _pick_tile(K, 1024, 128)
    grid = (M // tm, N // tn, K // tk)
    vmem = _vmem_limit(
        _nbytes((tm, tk), x2d.dtype), _nbytes((tk, tn), w.dtype),
        _nbytes((1, tn), jnp.float32), _nbytes((tm, tn), residual.dtype),
        _nbytes((tm, tn), residual.dtype), _nbytes((tm, tn), jnp.float32))
    return pl.pallas_call(
        _linear_res_kernel,
        out_shape=jax.ShapeDtypeStruct((M, N), residual.dtype),
        grid=grid,
        in_specs=[
            pl.BlockSpec((tm, tk), lambda i, j, k: (i, k)),
            pl.BlockSpec((tk, tn), lambda i, j, k: (k, j)),
            pl.BlockSpec((1, tn), lambda i, j, k: (0, j)),
            pl.BlockSpec((tm, tn), lambda i, j, k: (i, j)),  # residual, resident over k
        ],
        out_specs=pl.BlockSpec((tm, tn), lambda i, j, k: (i, j)),
        scratch_shapes=[pltpu.VMEM((tm, tn), jnp.float32)],
        compiler_params=pltpu.CompilerParams(
            dimension_semantics=("parallel", "parallel", "arbitrary"),
            vmem_limit_bytes=vmem),
    )(x2d, w, b.reshape(1, N), residual)


def _mha_body(qkv_ref, m_ref, o_ref, *, n_head, d_head, scale, mask_heads):
    # One grid step = one (pseudo-)batch element, all heads.  qkv columns are
    # permuted at init to [Q(all heads) | K | V], each slab D-aligned; each
    # head's result is stored straight into its output column slab so at most
    # one head of f32 intermediates is live at a time (no lane concatenate).
    # TODO(synk): for long sequences convert to a flash-style kernel tiled
    # over the KV axis with online softmax, and add a second parallel grid
    # axis (head groups / q-row tiles) so v7x's 2 TensorCores stay balanced
    # at small B; CLIP sequences are short enough that full (S,S) logits per
    # head fit comfortably.
    qkv = qkv_ref[0]                               # (S, 3D) bf16
    D = n_head * d_head
    for h in range(n_head):
        q = qkv[:, h * d_head:(h + 1) * d_head]
        k = qkv[:, D + h * d_head:D + (h + 1) * d_head]
        v = qkv[:, 2 * D + h * d_head:2 * D + (h + 1) * d_head]
        # q @ k^T without materializing a transpose: contract the last dims.
        logits = jax.lax.dot_general(
            q, k, dimension_numbers=(((1,), (1,)), ((), ())),
            preferred_element_type=jnp.float32) * scale
        if m_ref is not None:
            # Additive mask: one vadd per (S,S) tile instead of compare+select.
            logits = logits + m_ref[0, h if mask_heads == n_head else 0]
        logits = logits - jnp.max(logits, axis=-1, keepdims=True)
        p = jnp.exp(logits)
        p = p * pl.reciprocal(jnp.sum(p, axis=-1, keepdims=True), approx=True)
        out_h = jnp.dot(p.astype(qkv.dtype), v,
                        preferred_element_type=jnp.float32)
        o_ref[0, :, h * d_head:(h + 1) * d_head] = out_h.astype(o_ref.dtype)


def _mha_kernel(qkv_ref, o_ref, *, n_head, d_head, scale):
    _mha_body(qkv_ref, None, o_ref, n_head=n_head, d_head=d_head,
              scale=scale, mask_heads=0)


def _mha_kernel_masked(qkv_ref, m_ref, o_ref, *, n_head, d_head, scale,
                       mask_heads):
    _mha_body(qkv_ref, m_ref, o_ref, n_head=n_head, d_head=d_head,
              scale=scale, mask_heads=mask_heads)


def multi_head_attention(qkv3, n_head, d_head, add_mask=None):
    # qkv3: (B, S, 3D) bf16 in the module's flat pseudo-batch layout, columns
    # permuted to [Q | K | V].  add_mask: optional additive f32 (Bm,Hm,S,S).
    B, S, threeD = qkv3.shape
    D = n_head * d_head
    scale = 1.0 / math.sqrt(d_head)
    qkv_spec = pl.BlockSpec((1, S, threeD), lambda b: (b, 0, 0))
    out_spec = pl.BlockSpec((1, S, D), lambda b: (b, 0, 0))
    vmem = _vmem_limit(_nbytes((1, S, threeD), qkv3.dtype),
                       _nbytes((1, S, D), qkv3.dtype),
                       _nbytes((n_head, S, S), jnp.float32))

    if add_mask is None:
        kernel = partial(_mha_kernel, n_head=n_head, d_head=d_head, scale=scale)
        in_specs = [qkv_spec]
        args = (qkv3,)
    else:
        Bm, Hm = add_mask.shape[0], add_mask.shape[1]
        assert Bm in (1, B) and Hm in (1, n_head), "unsupported mask shape"
        assert add_mask.shape[2] == S and add_mask.shape[3] == S
        if Bm == B and B > 1:
            m_idx = lambda b: (b, 0, 0, 0)
        else:
            # Single shared mask block, kept resident in VMEM across the grid
            # (no (B, H, S, S) broadcast through HBM).
            m_idx = lambda b: (0, 0, 0, 0)
        kernel = partial(_mha_kernel_masked, n_head=n_head, d_head=d_head,
                         scale=scale, mask_heads=Hm)
        in_specs = [qkv_spec, pl.BlockSpec((1, Hm, S, S), m_idx)]
        args = (qkv3, add_mask)

    return pl.pallas_call(
        kernel,
        out_shape=jax.ShapeDtypeStruct((B, S, D), qkv3.dtype),
        grid=(B,),
        in_specs=in_specs,
        out_specs=out_spec,
        compiler_params=pltpu.CompilerParams(
            dimension_semantics=("parallel",),
            vmem_limit_bytes=vmem),
    )(*args)


# ----------------------------- glue / params -------------------------------

def expand_mask(mask):
    assert mask.ndim >= 2, "Mask must be at least 2-dimensional"
    if mask.ndim == 3:
        mask = mask[:, None]
    while mask.ndim < 4:
        mask = mask[None]
    return mask


def additive_mask(mask):
    # masked_fill(mask == 0, -9e15) is numerically identical to adding -9e15
    # (logit magnitudes vanish against -9e15's f32 ulp) — one vadd in-kernel.
    m4 = expand_mask(mask)
    return jnp.where(m4 == 0, jnp.float32(-9e15), jnp.float32(0.0))


def _qkv_out_perm(n_head, d_head):
    # Module qkv column order: head-major with per-head [q|k|v] (3*dh each).
    # Kernel column order: [Q(all heads) | K | V], head-major inside a slab.
    idx = []
    for comp in range(3):
        for h in range(n_head):
            base = h * 3 * d_head + comp * d_head
            idx.extend(range(base, base + d_head))
    return jnp.asarray(idx, dtype=jnp.int32)


def xavier_uniform(key, out_f, in_f):
    a = math.sqrt(6.0 / (in_f + out_f))
    return jax.random.uniform(key, (out_f, in_f), jnp.float32, -a, a)


def torch_linear_default(key, out_f, in_f):
    bound = 1.0 / math.sqrt(in_f)
    kw, kb = jax.random.split(key)
    w = jax.random.uniform(kw, (out_f, in_f), jnp.float32, -bound, bound)
    b = jax.random.uniform(kb, (out_f,), jnp.float32, -bound, bound)
    return w, b


def lora_delta(key, out_f, in_f, rank=4, alpha=4.0):
    # TODO(synk): LoRALinear is not defined in the source file; standard LoRA
    # init (A ~ N(0, 0.02), B = 0) is assumed and the delta is folded into W.
    A = 0.02 * jax.random.normal(key, (rank, in_f), jnp.float32)
    B = jnp.zeros((out_f, rank), jnp.float32)
    return (alpha / rank) * (B @ A)


def init_block_params(key, d, n_head):
    dh = d // n_head
    ks = jax.random.split(key, 8)
    w_qkv = xavier_uniform(ks[0], 3 * d, d) + lora_delta(ks[1], 3 * d, d)
    w_out = xavier_uniform(ks[2], d, d) + lora_delta(ks[3], d, d)
    w_fc, b_fc = torch_linear_default(ks[4], 4 * d, d)
    w_fc = w_fc + lora_delta(ks[5], 4 * d, d)
    w_pr, b_pr = torch_linear_default(ks[6], d, 4 * d)
    w_pr = w_pr + lora_delta(ks[7], d, 4 * d)
    # Permute qkv output columns (free) so the MHA kernel sees [Q | K | V]
    # slabs; the attention output stays in the module's head-major order, so
    # w_out needs no permutation.
    perm = _qkv_out_perm(n_head, dh)
    w_qkv = w_qkv[perm, :]
    b_qkv = jnp.zeros((3 * d,), jnp.float32)[perm]
    # Weights pre-cast to bf16 in HBM (halves weight DMA); biases/LN stay f32.
    return dict(
        w_qkv=w_qkv.T.astype(MXU_DTYPE), b_qkv=b_qkv,
        w_out=w_out.T.astype(MXU_DTYPE), b_out=jnp.zeros((d,), jnp.float32),
        w_fc=w_fc.T.astype(MXU_DTYPE), b_fc=b_fc,
        w_proj=w_pr.T.astype(MXU_DTYPE), b_proj=b_pr,
        ln1_g=jnp.ones((d,), jnp.float32), ln1_b=jnp.zeros((d,), jnp.float32),
        ln2_g=jnp.ones((d,), jnp.float32), ln2_b=jnp.zeros((d,), jnp.float32),
    )


def block_forward(x, p, n_head, add_mask=None):
    S, B, D = x.shape
    dh = D // n_head
    x2d = x.reshape(S * B, D)                         # flattened (S, B, D), f32

    # --- attention branch: fused LN1 + qkv projection (bf16 intermediate) ---
    qkv2d = ln_linear(x2d, p["ln1_g"], p["ln1_b"], p["w_qkv"], p["b_qkv"],
                      out_dtype=MXU_DTYPE)
    # Faithful reproduction of the module's raw reshape of the (S, B, 3D)
    # tensor into (B, S, ...): a free row-major view (mixes seq & batch when
    # B > 1, exactly like the PyTorch code).
    qkv3 = qkv2d.reshape(B, S, 3 * D)
    vals = multi_head_attention(qkv3, n_head, dh, add_mask)   # (B, S, D) bf16
    # out_proj acts row-wise, so permute rows to (S, B, D) ordering first and
    # fuse bias + residual add into the projection kernel.  The permute is one
    # small bf16 XLA transpose per block.
    # TODO(synk): fold this permute into an (S,1,D)-block out_spec of the MHA
    # call once that block shape is verified to lower on all generations.
    vals_sb = jnp.transpose(vals, (1, 0, 2)).reshape(S * B, D)
    x2d = linear_residual(vals_sb, p["w_out"], p["b_out"], x2d)

    # --- MLP branch: fused LN2 + c_fc + QuickGELU, then c_proj + residual ---
    h = ln_linear(x2d, p["ln2_g"], p["ln2_b"], p["w_fc"], p["b_fc"],
                  quick_gelu=True, out_dtype=MXU_DTYPE)
    x2d = linear_residual(h, p["w_proj"], p["b_proj"], x2d)
    return x2d.reshape(S, B, D)


def transformer_forward(x, layer_params, n_head, attn_mask=None):
    add_mask = None if attn_mask is None else additive_mask(attn_mask)
    for p in layer_params:
        x = block_forward(x, p, n_head, add_mask)
    return x


# --------------------------------- main -------------------------------------

if __name__ == "__main__":
    width, layers, heads = 32, 2, 4
    seq, batch = 8, 2

    key = jax.random.PRNGKey(0)
    kx, kp = jax.random.split(key)
    x = jax.random.normal(kx, (seq, batch, width), jnp.float32)
    pkeys = jax.random.split(kp, layers)
    params = [init_block_params(pkeys[i], width, heads) for i in range(layers)]

    fwd = jax.jit(transformer_forward, static_argnums=(2,))

    # Unmasked path.
    y = jax.block_until_ready(fwd(x, params, heads, None))
    assert y.shape == (seq, batch, width) and y.dtype == jnp.float32
    assert bool(jnp.all(jnp.isfinite(y)))

    # Masked path (shared causal mask, kept as a single (1,1,S,S) block).
    causal = jnp.tril(jnp.ones((seq, seq), jnp.float32))
    y_m = jax.block_until_ready(fwd(x, params, heads, causal))
    assert y_m.shape == (seq, batch, width)
    assert bool(jnp.all(jnp.isfinite(y_m)))

    print("KERNEL_OK")
</pallas_src>

<mosaic_0001>
module attributes {stable_mosaic.version = 11 : i64} {
  func.func @_linear_res_kernel(%arg0: i32, %arg1: i32, %arg2: i32, %arg3: memref<16x32xbf16, #tpu.memory_space<vmem>>, %arg4: memref<32x32xbf16, #tpu.memory_space<vmem>>, %arg5: memref<1x32xf32, #tpu.memory_space<vmem>>, %arg6: memref<16x32xf32, #tpu.memory_space<vmem>>, %arg7: memref<16x32xf32, #tpu.memory_space<vmem>>, %arg8: memref<16x32xf32, #tpu.memory_space<vmem>>) attributes {dimension_semantics = [#tpu.dimension_semantics<parallel>, #tpu.dimension_semantics<parallel>, #tpu.dimension_semantics<arbitrary>], iteration_bounds = array<i64: 1, 1, 1>, scalar_prefetch = 0 : i64, scratch_operands = 1 : i64, tpu.core_type = #tpu.core_type<tc>, window_params = [{transform_indices = @transform_0, window_bounds = array<i64: 16, 32>}, {transform_indices = @transform_1, window_bounds = array<i64: 32, 32>}, {transform_indices = @transform_2, window_bounds = array<i64: 1, 32>}, {transform_indices = @transform_3, window_bounds = array<i64: 16, 32>}, {transform_indices = @transform_4, window_bounds = array<i64: 16, 32>}]} {
    %c0_i32 = arith.constant 0 : i32
    %0 = arith.cmpi eq, %arg2, %c0_i32 : i32
    %1 = arith.extui %0 : i1 to i32
    %c0_i32_0 = arith.constant 0 : i32
    %2 = arith.cmpi ne, %1, %c0_i32_0 : i32
    scf.if %2 {
      %cst_10 = arith.constant 0.000000e+00 : f32
      %12 = vector.broadcast %cst_10 : f32 to vector<16x32xf32>
      %c0_11 = arith.constant 0 : index
      %c0_12 = arith.constant 0 : index
      %13 = vector.load %arg8[%c0_11, %c0_12] : memref<16x32xf32, #tpu.memory_space<vmem>>, vector<16x32xf32>
      tpu.vector_store %arg8[%c0_11, %c0_12], %12 {strides = array<i32>} : memref<16x32xf32, #tpu.memory_space<vmem>>, vector<16x32xf32>,
    } else {
    }
    %c0 = arith.constant 0 : index
    %c0_1 = arith.constant 0 : index
    %3 = vector.load %arg8[%c0, %c0_1] : memref<16x32xf32, #tpu.memory_space<vmem>>, vector<16x32xf32>
    %c0_2 = arith.constant 0 : index
    %c0_3 = arith.constant 0 : index
    %4 = vector.load %arg3[%c0_2, %c0_3] : memref<16x32xbf16, #tpu.memory_space<vmem>>, vector<16x32xbf16>
    %c0_4 = arith.constant 0 : index
    %c0_5 = arith.constant 0 : index
    %5 = vector.load %arg4[%c0_4, %c0_5] : memref<32x32xbf16, #tpu.memory_space<vmem>>, vector<32x32xbf16>
    %cst = arith.constant dense<0.000000e+00> : vector<16x32xf32>
    %6 = tpu.matmul %4, %5, %cst {dimension_numbers = #tpu.dot_dimension_numbers<[1], [0], [0], [1], [0, 0, 1, 1], [], []>} : vector<16x32xbf16>, vector<32x32xbf16>, vector<16x32xf32> -> vector<16x32xf32>
    %7 = arith.addf %3, %6 : vector<16x32xf32>
    %c0_6 = arith.constant 0 : index
    %c0_7 = arith.constant 0 : index
    %8 = vector.load %arg8[%c0_6, %c0_7] : memref<16x32xf32, #tpu.memory_space<vmem>>, vector<16x32xf32>
    tpu.vector_store %arg8[%c0_6, %c0_7], %7 {strides = array<i32>} : memref<16x32xf32, #tpu.memory_space<vmem>>, vector<16x32xf32>,
    %c0_i32_8 = arith.constant 0 : i32
    %9 = arith.cmpi eq, %arg2, %c0_i32_8 : i32
    %10 = arith.extui %9 : i1 to i32
    %c0_i32_9 = arith.constant 0 : i32
    %11 = arith.cmpi ne, %10, %c0_i32_9 : i32
    scf.if %11 {
      %c0_10 = arith.constant 0 : index
      %c0_11 = arith.constant 0 : index
      %12 = vector.load %arg8[%c0_10, %c0_11] : memref<16x32xf32, #tpu.memory_space<vmem>>, vector<16x32xf32>
      %c0_12 = arith.constant 0 : index
      %c0_13 = arith.constant 0 : index
      %13 = vector.load %arg5[%c0_12, %c0_13] : memref<1x32xf32, #tpu.memory_space<vmem>>, vector<1x32xf32>
      %14 = vector.broadcast %13 : vector<1x32xf32> to vector<16x32xf32>
      %15 = arith.addf %12, %14 : vector<16x32xf32>
      %c0_14 = arith.constant 0 : index
      %c0_15 = arith.constant 0 : index
      %16 = vector.load %arg6[%c0_14, %c0_15] : memref<16x32xf32, #tpu.memory_space<vmem>>, vector<16x32xf32>
      %17 = arith.addf %15, %16 : vector<16x32xf32>
      %c0_16 = arith.constant 0 : index
      %c0_17 = arith.constant 0 : index
      %18 = vector.load %arg7[%c0_16, %c0_17] : memref<16x32xf32, #tpu.memory_space<vmem>>, vector<16x32xf32>
      tpu.vector_store %arg7[%c0_16, %c0_17], %17 {strides = array<i32>} : memref<16x32xf32, #tpu.memory_space<vmem>>, vector<16x32xf32>,
    } else {
    }
    return
  }
  func.func @transform_0(%arg0: i32, %arg1: i32, %arg2: i32) -> (i32, i32) {
    %c0_i32 = arith.constant 0 : i32
    return %arg0, %arg2 : i32, i32
  }
  func.func @transform_1(%arg0: i32, %arg1: i32, %arg2: i32) -> (i32, i32) {
    %c0_i32 = arith.constant 0 : i32
    return %arg2, %arg1 : i32, i32
  }
  func.func @transform_2(%arg0: i32, %arg1: i32, %arg2: i32) -> (i32, i32) {
    %c0_i32 = arith.constant 0 : i32
    %c0_i32_0 = arith.constant 0 : i32
    return %c0_i32, %arg1 : i32, i32
  }
  func.func @transform_3(%arg0: i32, %arg1: i32, %arg2: i32) -> (i32, i32) {
    %c0_i32 = arith.constant 0 : i32
    return %arg0, %arg1 : i32, i32
  }
  func.func @transform_4(%arg0: i32, %arg1: i32, %arg2: i32) -> (i32, i32) {
    %c0_i32 = arith.constant 0 : i32
    return %arg0, %arg1 : i32, i32
  }
}

module attributes {stable_mosaic.version = 11 : i64} {
  func.func @_ln_linear_kernel(%arg0: i32, %arg1: i32, %arg2: memref<16x32xf32, #tpu.memory_space<vmem>>, %arg3: memref<1x32xf32, #tpu.memory_space<vmem>>, %arg4: memref<1x32xf32, #tpu.memory_space<vmem>>, %arg5: memref<32x96xbf16, #tpu.memory_space<vmem>>, %arg6: memref<1x96xf32, #tpu.memory_space<vmem>>, %arg7: memref<16x96xbf16, #tpu.memory_space<vmem>>, %arg8: memref<16x32xbf16, #tpu.memory_space<vmem>>) attributes {dimension_semantics = [#tpu.dimension_semantics<parallel>, #tpu.dimension_semantics<arbitrary>], iteration_bounds = array<i64: 1, 1>, scalar_prefetch = 0 : i64, scratch_operands = 1 : i64, tpu.core_type = #tpu.core_type<tc>, window_params = [{transform_indices = @transform_0, window_bounds = array<i64: 16, 32>}, {pipeline_mode = #tpu.pipeline_mode<synchronous>, transform_indices = @transform_1, window_bounds = array<i64: 1, 32>}, {pipeline_mode = #tpu.pipeline_mode<synchronous>, transform_indices = @transform_2, window_bounds = array<i64: 1, 32>}, {transform_indices = @transform_3, window_bounds = array<i64: 32, 96>}, {transform_indices = @transform_4, window_bounds = array<i64: 1, 96>}, {transform_indices = @transform_5, window_bounds = array<i64: 16, 96>}]} {
    %c0_i32 = arith.constant 0 : i32
    %0 = arith.cmpi eq, %arg1, %c0_i32 : i32
    %1 = arith.extui %0 : i1 to i32
    %c0_i32_0 = arith.constant 0 : i32
    %2 = arith.cmpi ne, %1, %c0_i32_0 : i32
    scf.if %2 {
      %c0_8 = arith.constant 0 : index
      %c0_9 = arith.constant 0 : index
      %11 = vector.load %arg2[%c0_8, %c0_9] : memref<16x32xf32, #tpu.memory_space<vmem>>, vector<16x32xf32>
      %cst_10 = arith.constant dense<0.000000e+00> : vector<16xf32>
      %12 = vector.multi_reduction <add>, %11, %cst_10 [1] : vector<16x32xf32> to vector<16xf32>
      %13 = vector.shape_cast %12 : vector<16xf32> to vector<16x1xf32>
      %cst_11 = arith.constant 3.200000e+01 : f32
      %14 = vector.broadcast %cst_11 : f32 to vector<16x1xf32>
      %15 = arith.divf %13, %14 : vector<16x1xf32>
      %16 = vector.broadcast %15 : vector<16x1xf32> to vector<16x32xf32>
      %17 = arith.subf %11, %16 : vector<16x32xf32>
      %18 = arith.mulf %17, %17 : vector<16x32xf32>
      %cst_12 = arith.constant dense<0.000000e+00> : vector<16xf32>
      %19 = vector.multi_reduction <add>, %18, %cst_12 [1] : vector<16x32xf32> to vector<16xf32>
      %20 = vector.shape_cast %19 : vector<16xf32> to vector<16x1xf32>
      %cst_13 = arith.constant 3.200000e+01 : f32
      %21 = vector.broadcast %cst_13 : f32 to vector<16x1xf32>
      %22 = arith.divf %20, %21 : vector<16x1xf32>
      %23 = vector.broadcast %15 : vector<16x1xf32> to vector<16x32xf32>
      %24 = arith.subf %11, %23 : vector<16x32xf32>
      %cst_14 = arith.constant 9.99999974E-6 : f32
      %25 = vector.broadcast %cst_14 : f32 to vector<16x1xf32>
      %26 = arith.addf %22, %25 : vector<16x1xf32>
      %27 = math.rsqrt %26 : vector<16x1xf32>
      %28 = vector.broadcast %27 : vector<16x1xf32> to vector<16x32xf32>
      %29 = arith.mulf %24, %28 : vector<16x32xf32>
      %c0_15 = arith.constant 0 : index
      %c0_16 = arith.constant 0 : index
      %30 = vector.load %arg3[%c0_15, %c0_16] : memref<1x32xf32, #tpu.memory_space<vmem>>, vector<1x32xf32>
      %31 = vector.broadcast %30 : vector<1x32xf32> to vector<16x32xf32>
      %32 = arith.mulf %29, %31 : vector<16x32xf32>
      %c0_17 = arith.constant 0 : index
      %c0_18 = arith.constant 0 : index
      %33 = vector.load %arg4[%c0_17, %c0_18] : memref<1x32xf32, #tpu.memory_space<vmem>>, vector<1x32xf32>
      %34 = vector.broadcast %33 : vector<1x32xf32> to vector<16x32xf32>
      %35 = arith.addf %32, %34 : vector<16x32xf32>
      %36 = arith.truncf %35 : vector<16x32xf32> to vector<16x32xbf16>
      %c0_19 = arith.constant 0 : index
      %c0_20 = arith.constant 0 : index
      %37 = vector.load %arg8[%c0_19, %c0_20] : memref<16x32xbf16, #tpu.memory_space<vmem>>, vector<16x32xbf16>
      tpu.vector_store %arg8[%c0_19, %c0_20], %36 {strides = array<i32>} : memref<16x32xbf16, #tpu.memory_space<vmem>>, vector<16x32xbf16>,
    } else {
    }
    %c0 = arith.constant 0 : index
    %c0_1 = arith.constant 0 : index
    %3 = vector.load %arg8[%c0, %c0_1] : memref<16x32xbf16, #tpu.memory_space<vmem>>, vector<16x32xbf16>
    %c0_2 = arith.constant 0 : index
    %c0_3 = arith.constant 0 : index
    %4 = vector.load %arg5[%c0_2, %c0_3] : memref<32x96xbf16, #tpu.memory_space<vmem>>, vector<32x96xbf16>
    %cst = arith.constant dense<0.000000e+00> : vector<16x96xf32>
    %5 = tpu.matmul %3, %4, %cst {dimension_numbers = #tpu.dot_dimension_numbers<[1], [0], [0], [1], [0, 0, 1, 1], [], []>} : vector<16x32xbf16>, vector<32x96xbf16>, vector<16x96xf32> -> vector<16x96xf32>
    %c0_4 = arith.constant 0 : index
    %c0_5 = arith.constant 0 : index
    %6 = vector.load %arg6[%c0_4, %c0_5] : memref<1x96xf32, #tpu.memory_space<vmem>>, vector<1x96xf32>
    %7 = vector.broadcast %6 : vector<1x96xf32> to vector<16x96xf32>
    %8 = arith.addf %5, %7 : vector<16x96xf32>
    %9 = arith.truncf %8 : vector<16x96xf32> to vector<16x96xbf16>
    %c0_6 = arith.constant 0 : index
    %c0_7 = arith.constant 0 : index
    %10 = vector.load %arg7[%c0_6, %c0_7] : memref<16x96xbf16, #tpu.memory_space<vmem>>, vector<16x96xbf16>
    tpu.vector_store %arg7[%c0_6, %c0_7], %9 {strides = array<i32>} : memref<16x96xbf16, #tpu.memory_space<vmem>>, vector<16x96xbf16>,
    return
  }
  func.func @transform_0(%arg0: i32, %arg1: i32) -> (i32, i32) {
    %c0_i32 = arith.constant 0 : i32
    %c0_i32_0 = arith.constant 0 : i32
    return %arg0, %c0_i32 : i32, i32
  }
  func.func @transform_1(%arg0: i32, %arg1: i32) -> (i32, i32) {
    %c0_i32 = arith.constant 0 : i32
    %c0_i32_0 = arith.constant 0 : i32
    %c0_i32_1 = arith.constant 0 : i32
    return %c0_i32, %c0_i32_0 : i32, i32
  }
  func.func @transform_2(%arg0: i32, %arg1: i32) -> (i32, i32) {
    %c0_i32 = arith.constant 0 : i32
    %c0_i32_0 = arith.constant 0 : i32
    %c0_i32_1 = arith.constant 0 : i32
    return %c0_i32, %c0_i32_0 : i32, i32
  }
  func.func @transform_3(%arg0: i32, %arg1: i32) -> (i32, i32) {
    %c0_i32 = arith.constant 0 : i32
    %c0_i32_0 = arith.constant 0 : i32
    return %c0_i32, %arg1 : i32, i32
  }
  func.func @transform_4(%arg0: i32, %arg1: i32) -> (i32, i32) {
    %c0_i32 = arith.constant 0 : i32
    %c0_i32_0 = arith.constant 0 : i32
    return %c0_i32, %arg1 : i32, i32
  }
  func.func @transform_5(%arg0: i32, %arg1: i32) -> (i32, i32) {
    %c0_i32 = arith.constant 0 : i32
    return %arg0, %arg1 : i32, i32
  }
}

module attributes {stable_mosaic.version = 11 : i64} {
  func.func @_mha_kernel(%arg0: i32, %arg1: memref<1x8x96xbf16, #tpu.memory_space<vmem>>, %arg2: memref<1x8x32xbf16, #tpu.memory_space<vmem>>) attributes {dimension_semantics = [#tpu.dimension_semantics<parallel>], iteration_bounds = array<i64: 2>, scalar_prefetch = 0 : i64, scratch_operands = 0 : i64, tpu.core_type = #tpu.core_type<tc>, window_params = [{transform_indices = @transform_0, window_bounds = array<i64: 1, 8, 96>}, {transform_indices = @transform_1, window_bounds = array<i64: 1, 8, 32>}]} {
    %c0 = arith.constant 0 : index
    %c0_0 = arith.constant 0 : index
    %c0_1 = arith.constant 0 : index
    %0 = vector.load %arg1[%c0, %c0_0, %c0_1] : memref<1x8x96xbf16, #tpu.memory_space<vmem>>, vector<1x8x96xbf16>
    %1 = vector.shape_cast %0 : vector<1x8x96xbf16> to vector<8x96xbf16>
    %2 = vector.extract_strided_slice %1 {offsets = [0, 0], sizes = [8, 8], strides = [1, 1]} : vector<8x96xbf16> to vector<8x8xbf16>
    %3 = vector.extract_strided_slice %1 {offsets = [0, 32], sizes = [8, 8], strides = [1, 1]} : vector<8x96xbf16> to vector<8x8xbf16>
    %4 = vector.extract_strided_slice %1 {offsets = [0, 64], sizes = [8, 8], strides = [1, 1]} : vector<8x96xbf16> to vector<8x8xbf16>
    %cst = arith.constant dense<0.000000e+00> : vector<8x8xf32>
    %5 = tpu.matmul %2, %3, %cst {dimension_numbers = #tpu.dot_dimension_numbers<[1], [1], [0], [0], [0, 0, 1, 0], [], []>} : vector<8x8xbf16>, vector<8x8xbf16>, vector<8x8xf32> -> vector<8x8xf32>
    %cst_2 = arith.constant 0.353553385 : f32
    %6 = vector.broadcast %cst_2 : f32 to vector<8x8xf32>
    %7 = arith.mulf %5, %6 : vector<8x8xf32>
    %cst_3 = arith.constant dense<0xFF800000> : vector<8xf32>
    %8 = vector.multi_reduction <maximumf>, %7, %cst_3 [1] : vector<8x8xf32> to vector<8xf32>
    %9 = vector.shape_cast %8 : vector<8xf32> to vector<8x1xf32>
    %10 = vector.broadcast %9 : vector<8x1xf32> to vector<8x8xf32>
    %11 = arith.subf %7, %10 : vector<8x8xf32>
    %12 = math.exp %11 : vector<8x8xf32>
    %cst_4 = arith.constant dense<0.000000e+00> : vector<8xf32>
    %13 = vector.multi_reduction <add>, %12, %cst_4 [1] : vector<8x8xf32> to vector<8xf32>
    %14 = vector.shape_cast %13 : vector<8xf32> to vector<8x1xf32>
    %15 = tpu.reciprocal %14 {approx = true} : vector<8x1xf32> -> vector<8x1xf32>
    %16 = vector.broadcast %15 : vector<8x1xf32> to vector<8x8xf32>
    %17 = arith.mulf %12, %16 : vector<8x8xf32>
    %18 = arith.truncf %17 : vector<8x8xf32> to vector<8x8xbf16>
    %cst_5 = arith.constant dense<0.000000e+00> : vector<8x8xf32>
    %19 = tpu.matmul %18, %4, %cst_5 {dimension_numbers = #tpu.dot_dimension_numbers<[1], [0], [0], [1], [0, 0, 1, 1], [], []>} : vector<8x8xbf16>, vector<8x8xbf16>, vector<8x8xf32> -> vector<8x8xf32>
    %20 = arith.truncf %19 : vector<8x8xf32> to vector<8x8xbf16>
    %c0_6 = arith.constant 0 : index
    %c0_7 = arith.constant 0 : index
    %c0_8 = arith.constant 0 : index
    %21 = vector.load %arg2[%c0_6, %c0_7, %c0_8] : memref<1x8x32xbf16, #tpu.memory_space<vmem>>, vector<1x8x8xbf16>
    %22 = vector.shape_cast %21 : vector<1x8x8xbf16> to vector<8x8xbf16>
    %23 = vector.shape_cast %20 : vector<8x8xbf16> to vector<1x8x8xbf16>
    tpu.vector_store %arg2[%c0_6, %c0_7, %c0_8], %23 {strides = array<i32>} : memref<1x8x32xbf16, #tpu.memory_space<vmem>>, vector<1x8x8xbf16>,
    %24 = vector.extract_strided_slice %1 {offsets = [0, 8], sizes = [8, 8], strides = [1, 1]} : vector<8x96xbf16> to vector<8x8xbf16>
    %25 = vector.extract_strided_slice %1 {offsets = [0, 40], sizes = [8, 8], strides = [1, 1]} : vector<8x96xbf16> to vector<8x8xbf16>
    %26 = vector.extract_strided_slice %1 {offsets = [0, 72], sizes = [8, 8], strides = [1, 1]} : vector<8x96xbf16> to vector<8x8xbf16>
    %cst_9 = arith.constant dense<0.000000e+00> : vector<8x8xf32>
    %27 = tpu.matmul %24, %25, %cst_9 {dimension_numbers = #tpu.dot_dimension_numbers<[1], [1], [0], [0], [0, 0, 1, 0], [], []>} : vector<8x8xbf16>, vector<8x8xbf16>, vector<8x8xf32> -> vector<8x8xf32>
    %cst_10 = arith.constant 0.353553385 : f32
    %28 = vector.broadcast %cst_10 : f32 to vector<8x8xf32>
    %29 = arith.mulf %27, %28 : vector<8x8xf32>
    %cst_11 = arith.constant dense<0xFF800000> : vector<8xf32>
    %30 = vector.multi_reduction <maximumf>, %29, %cst_11 [1] : vector<8x8xf32> to vector<8xf32>
    %31 = vector.shape_cast %30 : vector<8xf32> to vector<8x1xf32>
    %32 = vector.broadcast %31 : vector<8x1xf32> to vector<8x8xf32>
    %33 = arith.subf %29, %32 : vector<8x8xf32>
    %34 = math.exp %33 : vector<8x8xf32>
    %cst_12 = arith.constant dense<0.000000e+00> : vector<8xf32>
    %35 = vector.multi_reduction <add>, %34, %cst_12 [1] : vector<8x8xf32> to vector<8xf32>
    %36 = vector.shape_cast %35 : vector<8xf32> to vector<8x1xf32>
    %37 = tpu.reciprocal %36 {approx = true} : vector<8x1xf32> -> vector<8x1xf32>
    %38 = vector.broadcast %37 : vector<8x1xf32> to vector<8x8xf32>
    %39 = arith.mulf %34, %38 : vector<8x8xf32>
    %40 = arith.truncf %39 : vector<8x8xf32> to vector<8x8xbf16>
    %cst_13 = arith.constant dense<0.000000e+00> : vector<8x8xf32>
    %41 = tpu.matmul %40, %26, %cst_13 {dimension_numbers = #tpu.dot_dimension_numbers<[1], [0], [0], [1], [0, 0, 1, 1], [], []>} : vector<8x8xbf16>, vector<8x8xbf16>, vector<8x8xf32> -> vector<8x8xf32>
    %42 = arith.truncf %41 : vector<8x8xf32> to vector<8x8xbf16>
    %c0_14 = arith.constant 0 : index
    %c0_15 = arith.constant 0 : index
    %c8 = arith.constant 8 : index
    %43 = vector.load %arg2[%c0_14, %c0_15, %c8] : memref<1x8x32xbf16, #tpu.memory_space<vmem>>, vector<1x8x8xbf16>
    %44 = vector.shape_cast %43 : vector<1x8x8xbf16> to vector<8x8xbf16>
    %45 = vector.shape_cast %42 : vector<8x8xbf16> to vector<1x8x8xbf16>
    tpu.vector_store %arg2[%c0_14, %c0_15, %c8], %45 {strides = array<i32>} : memref<1x8x32xbf16, #tpu.memory_space<vmem>>, vector<1x8x8xbf16>,
    %46 = vector.extract_strided_slice %1 {offsets = [0, 16], sizes = [8, 8], strides = [1, 1]} : vector<8x96xbf16> to vector<8x8xbf16>
    %47 = vector.extract_strided_slice %1 {offsets = [0, 48], sizes = [8, 8], strides = [1, 1]} : vector<8x96xbf16> to vector<8x8xbf16>
    %48 = vector.extract_strided_slice %1 {offsets = [0, 80], sizes = [8, 8], strides = [1, 1]} : vector<8x96xbf16> to vector<8x8xbf16>
    %cst_16 = arith.constant dense<0.000000e+00> : vector<8x8xf32>
    %49 = tpu.matmul %46, %47, %cst_16 {dimension_numbers = #tpu.dot_dimension_numbers<[1], [1], [0], [0], [0, 0, 1, 0], [], []>} : vector<8x8xbf16>, vector<8x8xbf16>, vector<8x8xf32> -> vector<8x8xf32>
    %cst_17 = arith.constant 0.353553385 : f32
    %50 = vector.broadcast %cst_17 : f32 to vector<8x8xf32>
    %51 = arith.mulf %49, %50 : vector<8x8xf32>
    %cst_18 = arith.constant dense<0xFF800000> : vector<8xf32>
    %52 = vector.multi_reduction <maximumf>, %51, %cst_18 [1] : vector<8x8xf32> to vector<8xf32>
    %53 = vector.shape_cast %52 : vector<8xf32> to vector<8x1xf32>
    %54 = vector.broadcast %53 : vector<8x1xf32> to vector<8x8xf32>
    %55 = arith.subf %51, %54 : vector<8x8xf32>
    %56 = math.exp %55 : vector<8x8xf32>
    %cst_19 = arith.constant dense<0.000000e+00> : vector<8xf32>
    %57 = vector.multi_reduction <add>, %56, %cst_19 [1] : vector<8x8xf32> to vector<8xf32>
    %58 = vector.shape_cast %57 : vector<8xf32> to vector<8x1xf32>
    %59 = tpu.reciprocal %58 {approx = true} : vector<8x1xf32> -> vector<8x1xf32>
    %60 = vector.broadcast %59 : vector<8x1xf32> to vector<8x8xf32>
    %61 = arith.mulf %56, %60 : vector<8x8xf32>
    %62 = arith.truncf %61 : vector<8x8xf32> to vector<8x8xbf16>
    %cst_20 = arith.constant dense<0.000000e+00> : vector<8x8xf32>
    %63 = tpu.matmul %62, %48, %cst_20 {dimension_numbers = #tpu.dot_dimension_numbers<[1], [0], [0], [1], [0, 0, 1, 1], [], []>} : vector<8x8xbf16>, vector<8x8xbf16>, vector<8x8xf32> -> vector<8x8xf32>
    %64 = arith.truncf %63 : vector<8x8xf32> to vector<8x8xbf16>
    %c0_21 = arith.constant 0 : index
    %c0_22 = arith.constant 0 : index
    %c16 = arith.constant 16 : index
    %65 = vector.load %arg2[%c0_21, %c0_22, %c16] : memref<1x8x32xbf16, #tpu.memory_space<vmem>>, vector<1x8x8xbf16>
    %66 = vector.shape_cast %65 : vector<1x8x8xbf16> to vector<8x8xbf16>
    %67 = vector.shape_cast %64 : vector<8x8xbf16> to vector<1x8x8xbf16>
    tpu.vector_store %arg2[%c0_21, %c0_22, %c16], %67 {strides = array<i32>} : memref<1x8x32xbf16, #tpu.memory_space<vmem>>, vector<1x8x8xbf16>,
    %68 = vector.extract_strided_slice %1 {offsets = [0, 24], sizes = [8, 8], strides = [1, 1]} : vector<8x96xbf16> to vector<8x8xbf16>
    %69 = vector.extract_strided_slice %1 {offsets = [0, 56], sizes = [8, 8], strides = [1, 1]} : vector<8x96xbf16> to vector<8x8xbf16>
    %70 = vector.extract_strided_slice %1 {offsets = [0, 88], sizes = [8, 8], strides = [1, 1]} : vector<8x96xbf16> to vector<8x8xbf16>
    %cst_23 = arith.constant dense<0.000000e+00> : vector<8x8xf32>
    %71 = tpu.matmul %68, %69, %cst_23 {dimension_numbers = #tpu.dot_dimension_numbers<[1], [1], [0], [0], [0, 0, 1, 0], [], []>} : vector<8x8xbf16>, vector<8x8xbf16>, vector<8x8xf32> -> vector<8x8xf32>
    %cst_24 = arith.constant 0.353553385 : f32
    %72 = vector.broadcast %cst_24 : f32 to vector<8x8xf32>
    %73 = arith.mulf %71, %72 : vector<8x8xf32>
    %cst_25 = arith.constant dense<0xFF800000> : vector<8xf32>
    %74 = vector.multi_reduction <maximumf>, %73, %cst_25 [1] : vector<8x8xf32> to vector<8xf32>
    %75 = vector.shape_cast %74 : vector<8xf32> to vector<8x1xf32>
    %76 = vector.broadcast %75 : vector<8x1xf32> to vector<8x8xf32>
    %77 = arith.subf %73, %76 : vector<8x8xf32>
    %78 = math.exp %77 : vector<8x8xf32>
    %cst_26 = arith.constant dense<0.000000e+00> : vector<8xf32>
    %79 = vector.multi_reduction <add>, %78, %cst_26 [1] : vector<8x8xf32> to vector<8xf32>
    %80 = vector.shape_cast %79 : vector<8xf32> to vector<8x1xf32>
    %81 = tpu.reciprocal %80 {approx = true} : vector<8x1xf32> -> vector<8x1xf32>
    %82 = vector.broadcast %81 : vector<8x1xf32> to vector<8x8xf32>
    %83 = arith.mulf %78, %82 : vector<8x8xf32>
    %84 = arith.truncf %83 : vector<8x8xf32> to vector<8x8xbf16>
    %cst_27 = arith.constant dense<0.000000e+00> : vector<8x8xf32>
    %85 = tpu.matmul %84, %70, %cst_27 {dimension_numbers = #tpu.dot_dimension_numbers<[1], [0], [0], [1], [0, 0, 1, 1], [], []>} : vector<8x8xbf16>, vector<8x8xbf16>, vector<8x8xf32> -> vector<8x8xf32>
    %86 = arith.truncf %85 : vector<8x8xf32> to vector<8x8xbf16>
    %c0_28 = arith.constant 0 : index
    %c0_29 = arith.constant 0 : index
    %c24 = arith.constant 24 : index
    %87 = vector.load %arg2[%c0_28, %c0_29, %c24] : memref<1x8x32xbf16, #tpu.memory_space<vmem>>, vector<1x8x8xbf16>
    %88 = vector.shape_cast %87 : vector<1x8x8xbf16> to vector<8x8xbf16>
    %89 = vector.shape_cast %86 : vector<8x8xbf16> to vector<1x8x8xbf16>
    tpu.vector_store %arg2[%c0_28, %c0_29, %c24], %89 {strides = array<i32>} : memref<1x8x32xbf16, #tpu.memory_space<vmem>>, vector<1x8x8xbf16>,
    return
  }
  func.func @transform_0(%arg0: i32) -> (i32, i32, i32) {
    %c0_i32 = arith.constant 0 : i32
    %c0_i32_0 = arith.constant 0 : i32
    %c0_i32_1 = arith.constant 0 : i32
    return %arg0, %c0_i32, %c0_i32_0 : i32, i32, i32
  }
  func.func @transform_1(%arg0: i32) -> (i32, i32, i32) {
    %c0_i32 = arith.constant 0 : i32
    %c0_i32_0 = arith.constant 0 : i32
    %c0_i32_1 = arith.constant 0 : i32
    return %arg0, %c0_i32, %c0_i32_0 : i32, i32, i32
  }
}

module attributes {stable_mosaic.version = 11 : i64} {
  func.func @_ln_linear_kernel(%arg0: i32, %arg1: i32, %arg2: memref<16x32xf32, #tpu.memory_space<vmem>>, %arg3: memref<1x32xf32, #tpu.memory_space<vmem>>, %arg4: memref<1x32xf32, #tpu.memory_space<vmem>>, %arg5: memref<32x128xbf16, #tpu.memory_space<vmem>>, %arg6: memref<1x128xf32, #tpu.memory_space<vmem>>, %arg7: memref<16x128xbf16, #tpu.memory_space<vmem>>, %arg8: memref<16x32xbf16, #tpu.memory_space<vmem>>) attributes {dimension_semantics = [#tpu.dimension_semantics<parallel>, #tpu.dimension_semantics<arbitrary>], iteration_bounds = array<i64: 1, 1>, scalar_prefetch = 0 : i64, scratch_operands = 1 : i64, tpu.core_type = #tpu.core_type<tc>, window_params = [{transform_indices = @transform_0, window_bounds = array<i64: 16, 32>}, {pipeline_mode = #tpu.pipeline_mode<synchronous>, transform_indices = @transform_1, window_bounds = array<i64: 1, 32>}, {pipeline_mode = #tpu.pipeline_mode<synchronous>, transform_indices = @transform_2, window_bounds = array<i64: 1, 32>}, {transform_indices = @transform_3, window_bounds = array<i64: 32, 128>}, {transform_indices = @transform_4, window_bounds = array<i64: 1, 128>}, {transform_indices = @transform_5, window_bounds = array<i64: 16, 128>}]} {
    %c0_i32 = arith.constant 0 : i32
    %0 = arith.cmpi eq, %arg1, %c0_i32 : i32
    %1 = arith.extui %0 : i1 to i32
    %c0_i32_0 = arith.constant 0 : i32
    %2 = arith.cmpi ne, %1, %c0_i32_0 : i32
    scf.if %2 {
      %c0_10 = arith.constant 0 : index
      %c0_11 = arith.constant 0 : index
      %19 = vector.load %arg2[%c0_10, %c0_11] : memref<16x32xf32, #tpu.memory_space<vmem>>, vector<16x32xf32>
      %cst_12 = arith.constant dense<0.000000e+00> : vector<16xf32>
      %20 = vector.multi_reduction <add>, %19, %cst_12 [1] : vector<16x32xf32> to vector<16xf32>
      %21 = vector.shape_cast %20 : vector<16xf32> to vector<16x1xf32>
      %cst_13 = arith.constant 3.200000e+01 : f32
      %22 = vector.broadcast %cst_13 : f32 to vector<16x1xf32>
      %23 = arith.divf %21, %22 : vector<16x1xf32>
      %24 = vector.broadcast %23 : vector<16x1xf32> to vector<16x32xf32>
      %25 = arith.subf %19, %24 : vector<16x32xf32>
      %26 = arith.mulf %25, %25 : vector<16x32xf32>
      %cst_14 = arith.constant dense<0.000000e+00> : vector<16xf32>
      %27 = vector.multi_reduction <add>, %26, %cst_14 [1] : vector<16x32xf32> to vector<16xf32>
      %28 = vector.shape_cast %27 : vector<16xf32> to vector<16x1xf32>
      %cst_15 = arith.constant 3.200000e+01 : f32
      %29 = vector.broadcast %cst_15 : f32 to vector<16x1xf32>
      %30 = arith.divf %28, %29 : vector<16x1xf32>
      %31 = vector.broadcast %23 : vector<16x1xf32> to vector<16x32xf32>
      %32 = arith.subf %19, %31 : vector<16x32xf32>
      %cst_16 = arith.constant 9.99999974E-6 : f32
      %33 = vector.broadcast %cst_16 : f32 to vector<16x1xf32>
      %34 = arith.addf %30, %33 : vector<16x1xf32>
      %35 = math.rsqrt %34 : vector<16x1xf32>
      %36 = vector.broadcast %35 : vector<16x1xf32> to vector<16x32xf32>
      %37 = arith.mulf %32, %36 : vector<16x32xf32>
      %c0_17 = arith.constant 0 : index
      %c0_18 = arith.constant 0 : index
      %38 = vector.load %arg3[%c0_17, %c0_18] : memref<1x32xf32, #tpu.memory_space<vmem>>, vector<1x32xf32>
      %39 = vector.broadcast %38 : vector<1x32xf32> to vector<16x32xf32>
      %40 = arith.mulf %37, %39 : vector<16x32xf32>
      %c0_19 = arith.constant 0 : index
      %c0_20 = arith.constant 0 : index
      %41 = vector.load %arg4[%c0_19, %c0_20] : memref<1x32xf32, #tpu.memory_space<vmem>>, vector<1x32xf32>
      %42 = vector.broadcast %41 : vector<1x32xf32> to vector<16x32xf32>
      %43 = arith.addf %40, %42 : vector<16x32xf32>
      %44 = arith.truncf %43 : vector<16x32xf32> to vector<16x32xbf16>
      %c0_21 = arith.constant 0 : index
      %c0_22 = arith.constant 0 : index
      %45 = vector.load %arg8[%c0_21, %c0_22] : memref<16x32xbf16, #tpu.memory_space<vmem>>, vector<16x32xbf16>
      tpu.vector_store %arg8[%c0_21, %c0_22], %44 {strides = array<i32>} : memref<16x32xbf16, #tpu.memory_space<vmem>>, vector<16x32xbf16>,
    } else {
    }
    %c0 = arith.constant 0 : index
    %c0_1 = arith.constant 0 : index
    %3 = vector.load %arg8[%c0, %c0_1] : memref<16x32xbf16, #tpu.memory_space<vmem>>, vector<16x32xbf16>
    %c0_2 = arith.constant 0 : index
    %c0_3 = arith.constant 0 : index
    %4 = vector.load %arg5[%c0_2, %c0_3] : memref<32x128xbf16, #tpu.memory_space<vmem>>, vector<32x128xbf16>
    %cst = arith.constant dense<0.000000e+00> : vector<16x128xf32>
    %5 = tpu.matmul %3, %4, %cst {dimension_numbers = #tpu.dot_dimension_numbers<[1], [0], [0], [1], [0, 0, 1, 1], [], []>} : vector<16x32xbf16>, vector<32x128xbf16>, vector<16x128xf32> -> vector<16x128xf32>
    %c0_4 = arith.constant 0 : index
    %c0_5 = arith.constant 0 : index
    %6 = vector.load %arg6[%c0_4, %c0_5] : memref<1x128xf32, #tpu.memory_space<vmem>>, vector<1x128xf32>
    %7 = vector.broadcast %6 : vector<1x128xf32> to vector<16x128xf32>
    %8 = arith.addf %5, %7 : vector<16x128xf32>
    %cst_6 = arith.constant 1.702000e+00 : f32
    %9 = vector.broadcast %cst_6 : f32 to vector<16x128xf32>
    %10 = arith.mulf %9, %8 : vector<16x128xf32>
    %11 = arith.negf %10 : vector<16x128xf32>
    %12 = math.exp %11 : vector<16x128xf32>
    %cst_7 = arith.constant 1.000000e+00 : f32
    %13 = vector.broadcast %cst_7 : f32 to vector<16x128xf32>
    %14 = arith.addf %13, %12 : vector<16x128xf32>
    %15 = arith.divf %13, %14 : vector<16x128xf32>
    %16 = arith.mulf %8, %15 : vector<16x128xf32>
    %17 = arith.truncf %16 : vector<16x128xf32> to vector<16x128xbf16>
    %c0_8 = arith.constant 0 : index
    %c0_9 = arith.constant 0 : index
    %18 = vector.load %arg7[%c0_8, %c0_9] : memref<16x128xbf16, #tpu.memory_space<vmem>>, vector<16x128xbf16>
    tpu.vector_store %arg7[%c0_8, %c0_9], %17 {strides = array<i32>} : memref<16x128xbf16, #tpu.memory_space<vmem>>, vector<16x128xbf16>,
    return
  }
  func.func @transform_0(%arg0: i32, %arg1: i32) -> (i32, i32) {
    %c0_i32 = arith.constant 0 : i32
    %c0_i32_0 = arith.constant 0 : i32
    return %arg0, %c0_i32 : i32, i32
  }
  func.func @transform_1(%arg0: i32, %arg1: i32) -> (i32, i32) {
    %c0_i32 = arith.constant 0 : i32
    %c0_i32_0 = arith.constant 0 : i32
    %c0_i32_1 = arith.constant 0 : i32
    return %c0_i32, %c0_i32_0 : i32, i32
  }
  func.func @transform_2(%arg0: i32, %arg1: i32) -> (i32, i32) {
    %c0_i32 = arith.constant 0 : i32
    %c0_i32_0 = arith.constant 0 : i32
    %c0_i32_1 = arith.constant 0 : i32
    return %c0_i32, %c0_i32_0 : i32, i32
  }
  func.func @transform_3(%arg0: i32, %arg1: i32) -> (i32, i32) {
    %c0_i32 = arith.constant 0 : i32
    %c0_i32_0 = arith.constant 0 : i32
    return %c0_i32, %arg1 : i32, i32
  }
  func.func @transform_4(%arg0: i32, %arg1: i32) -> (i32, i32) {
    %c0_i32 = arith.constant 0 : i32
    %c0_i32_0 = arith.constant 0 : i32
    return %c0_i32, %arg1 : i32, i32
  }
  func.func @transform_5(%arg0: i32, %arg1: i32) -> (i32, i32) {
    %c0_i32 = arith.constant 0 : i32
    return %arg0, %arg1 : i32, i32
  }
}

module attributes {stable_mosaic.version = 11 : i64} {
  func.func @_linear_res_kernel(%arg0: i32, %arg1: i32, %arg2: i32, %arg3: memref<16x128xbf16, #tpu.memory_space<vmem>>, %arg4: memref<128x32xbf16, #tpu.memory_space<vmem>>, %arg5: memref<1x32xf32, #tpu.memory_space<vmem>>, %arg6: memref<16x32xf32, #tpu.memory_space<vmem>>, %arg7: memref<16x32xf32, #tpu.memory_space<vmem>>, %arg8: memref<16x32xf32, #tpu.memory_space<vmem>>) attributes {dimension_semantics = [#tpu.dimension_semantics<parallel>, #tpu.dimension_semantics<parallel>, #tpu.dimension_semantics<arbitrary>], iteration_bounds = array<i64: 1, 1, 1>, scalar_prefetch = 0 : i64, scratch_operands = 1 : i64, tpu.core_type = #tpu.core_type<tc>, window_params = [{transform_indices = @transform_0, window_bounds = array<i64: 16, 128>}, {transform_indices = @transform_1, window_bounds = array<i64: 128, 32>}, {transform_indices = @transform_2, window_bounds = array<i64: 1, 32>}, {transform_indices = @transform_3, window_bounds = array<i64: 16, 32>}, {transform_indices = @transform_4, window_bounds = array<i64: 16, 32>}]} {
    %c0_i32 = arith.constant 0 : i32
    %0 = arith.cmpi eq, %arg2, %c0_i32 : i32
    %1 = arith.extui %0 : i1 to i32
    %c0_i32_0 = arith.constant 0 : i32
    %2 = arith.cmpi ne, %1, %c0_i32_0 : i32
    scf.if %2 {
      %cst_10 = arith.constant 0.000000e+00 : f32
      %12 = vector.broadcast %cst_10 : f32 to vector<16x32xf32>
      %c0_11 = arith.constant 0 : index
      %c0_12 = arith.constant 0 : index
      %13 = vector.load %arg8[%c0_11, %c0_12] : memref<16x32xf32, #tpu.memory_space<vmem>>, vector<16x32xf32>
      tpu.vector_store %arg8[%c0_11, %c0_12], %12 {strides = array<i32>} : memref<16x32xf32, #tpu.memory_space<vmem>>, vector<16x32xf32>,
    } else {
    }
    %c0 = arith.constant 0 : index
    %c0_1 = arith.constant 0 : index
    %3 = vector.load %arg8[%c0, %c0_1] : memref<16x32xf32, #tpu.memory_space<vmem>>, vector<16x32xf32>
    %c0_2 = arith.constant 0 : index
    %c0_3 = arith.constant 0 : index
    %4 = vector.load %arg3[%c0_2, %c0_3] : memref<16x128xbf16, #tpu.memory_space<vmem>>, vector<16x128xbf16>
    %c0_4 = arith.constant 0 : index
    %c0_5 = arith.constant 0 : index
    %5 = vector.load %arg4[%c0_4, %c0_5] : memref<128x32xbf16, #tpu.memory_space<vmem>>, vector<128x32xbf16>
    %cst = arith.constant dense<0.000000e+00> : vector<16x32xf32>
    %6 = tpu.matmul %4, %5, %cst {dimension_numbers = #tpu.dot_dimension_numbers<[1], [0], [0], [1], [0, 0, 1, 1], [], []>} : vector<16x128xbf16>, vector<128x32xbf16>, vector<16x32xf32> -> vector<16x32xf32>
    %7 = arith.addf %3, %6 : vector<16x32xf32>
    %c0_6 = arith.constant 0 : index
    %c0_7 = arith.constant 0 : index
    %8 = vector.load %arg8[%c0_6, %c0_7] : memref<16x32xf32, #tpu.memory_space<vmem>>, vector<16x32xf32>
    tpu.vector_store %arg8[%c0_6, %c0_7], %7 {strides = array<i32>} : memref<16x32xf32, #tpu.memory_space<vmem>>, vector<16x32xf32>,
    %c0_i32_8 = arith.constant 0 : i32
    %9 = arith.cmpi eq, %arg2, %c0_i32_8 : i32
    %10 = arith.extui %9 : i1 to i32
    %c0_i32_9 = arith.constant 0 : i32
    %11 = arith.cmpi ne, %10, %c0_i32_9 : i32
    scf.if %11 {
      %c0_10 = arith.constant 0 : index
      %c0_11 = arith.constant 0 : index
      %12 = vector.load %arg8[%c0_10, %c0_11] : memref<16x32xf32, #tpu.memory_space<vmem>>, vector<16x32xf32>
      %c0_12 = arith.constant 0 : index
      %c0_13 = arith.constant 0 : index
      %13 = vector.load %arg5[%c0_12, %c0_13] : memref<1x32xf32, #tpu.memory_space<vmem>>, vector<1x32xf32>
      %14 = vector.broadcast %13 : vector<1x32xf32> to vector<16x32xf32>
      %15 = arith.addf %12, %14 : vector<16x32xf32>
      %c0_14 = arith.constant 0 : index
      %c0_15 = arith.constant 0 : index
      %16 = vector.load %arg6[%c0_14, %c0_15] : memref<16x32xf32, #tpu.memory_space<vmem>>, vector<16x32xf32>
      %17 = arith.addf %15, %16 : vector<16x32xf32>
      %c0_16 = arith.constant 0 : index
      %c0_17 = arith.constant 0 : index
      %18 = vector.load %arg7[%c0_16, %c0_17] : memref<16x32xf32, #tpu.memory_space<vmem>>, vector<16x32xf32>
      tpu.vector_store %arg7[%c0_16, %c0_17], %17 {strides = array<i32>} : memref<16x32xf32, #tpu.memory_space<vmem>>, vector<16x32xf32>,
    } else {
    }
    return
  }
  func.func @transform_0(%arg0: i32, %arg1: i32, %arg2: i32) -> (i32, i32) {
    %c0_i32 = arith.constant 0 : i32
    return %arg0, %arg2 : i32, i32
  }
  func.func @transform_1(%arg0: i32, %arg1: i32, %arg2: i32) -> (i32, i32) {
    %c0_i32 = arith.constant 0 : i32
    return %arg2, %arg1 : i32, i32
  }
  func.func @transform_2(%arg0: i32, %arg1: i32, %arg2: i32) -> (i32, i32) {
    %c0_i32 = arith.constant 0 : i32
    %c0_i32_0 = arith.constant 0 : i32
    return %c0_i32, %arg1 : i32, i32
  }
  func.func @transform_3(%arg0: i32, %arg1: i32, %arg2: i32) -> (i32, i32) {
    %c0_i32 = arith.constant 0 : i32
    return %arg0, %arg1 : i32, i32
  }
  func.func @transform_4(%arg0: i32, %arg1: i32, %arg2: i32) -> (i32, i32) {
    %c0_i32 = arith.constant 0 : i32
    return %arg0, %arg1 : i32, i32
  }
}

module attributes {stable_mosaic.version = 11 : i64} {
  func.func @_linear_res_kernel(%arg0: i32, %arg1: i32, %arg2: i32, %arg3: memref<16x128xbf16, #tpu.memory_space<vmem>>, %arg4: memref<128x32xbf16, #tpu.memory_space<vmem>>, %arg5: memref<1x32xf32, #tpu.memory_space<vmem>>, %arg6: memref<16x32xf32, #tpu.memory_space<vmem>>, %arg7: memref<16x32xf32, #tpu.memory_space<vmem>>, %arg8: memref<16x32xf32, #tpu.memory_space<vmem>>) attributes {dimension_semantics = [#tpu.dimension_semantics<parallel>, #tpu.dimension_semantics<parallel>, #tpu.dimension_semantics<arbitrary>], iteration_bounds = array<i64: 1, 1, 1>, scalar_prefetch = 0 : i64, scratch_operands = 1 : i64, tpu.core_type = #tpu.core_type<tc>, window_params = [{transform_indices = @transform_0, window_bounds = array<i64: 16, 128>}, {transform_indices = @transform_1, window_bounds = array<i64: 128, 32>}, {transform_indices = @transform_2, window_bounds = array<i64: 1, 32>}, {transform_indices = @transform_3, window_bounds = array<i64: 16, 32>}, {transform_indices = @transform_4, window_bounds = array<i64: 16, 32>}]} {
    %c0_i32 = arith.constant 0 : i32
    %0 = arith.cmpi eq, %arg2, %c0_i32 : i32
    %1 = arith.extui %0 : i1 to i32
    %c0_i32_0 = arith.constant 0 : i32
    %2 = arith.cmpi ne, %1, %c0_i32_0 : i32
    scf.if %2 {
      %cst_10 = arith.constant 0.000000e+00 : f32
      %12 = vector.broadcast %cst_10 : f32 to vector<16x32xf32>
      %c0_11 = arith.constant 0 : index
      %c0_12 = arith.constant 0 : index
      %13 = vector.load %arg8[%c0_11, %c0_12] : memref<16x32xf32, #tpu.memory_space<vmem>>, vector<16x32xf32>
      tpu.vector_store %arg8[%c0_11, %c0_12], %12 {strides = array<i32>} : memref<16x32xf32, #tpu.memory_space<vmem>>, vector<16x32xf32>,
    } else {
    }
    %c0 = arith.constant 0 : index
    %c0_1 = arith.constant 0 : index
    %3 = vector.load %arg8[%c0, %c0_1] : memref<16x32xf32, #tpu.memory_space<vmem>>, vector<16x32xf32>
    %c0_2 = arith.constant 0 : index
    %c0_3 = arith.constant 0 : index
    %4 = vector.load %arg3[%c0_2, %c0_3] : memref<16x128xbf16, #tpu.memory_space<vmem>>, vector<16x128xbf16>
    %c0_4 = arith.constant 0 : index
    %c0_5 = arith.constant 0 : index
    %5 = vector.load %arg4[%c0_4, %c0_5] : memref<128x32xbf16, #tpu.memory_space<vmem>>, vector<128x32xbf16>
    %cst = arith.constant dense<0.000000e+00> : vector<16x32xf32>
    %6 = tpu.matmul %4, %5, %cst {dimension_numbers = #tpu.dot_dimension_numbers<[1], [0], [0], [1], [0, 0, 1, 1], [], []>} : vector<16x128xbf16>, vector<128x32xbf16>, vector<16x32xf32> -> vector<16x32xf32>
    %7 = arith.addf %3, %6 : vector<16x32xf32>
    %c0_6 = arith.constant 0 : index
    %c0_7 = arith.constant 0 : index
    %8 = vector.load %arg8[%c0_6, %c0_7] : memref<16x32xf32, #tpu.memory_space<vmem>>, vector<16x32xf32>
    tpu.vector_store %arg8[%c0_6, %c0_7], %7 {strides = array<i32>} : memref<16x32xf32, #tpu.memory_space<vmem>>, vector<16x32xf32>,
    %c0_i32_8 = arith.constant 0 : i32
    %9 = arith.cmpi eq, %arg2, %c0_i32_8 : i32
    %10 = arith.extui %9 : i1 to i32
    %c0_i32_9 = arith.constant 0 : i32
    %11 = arith.cmpi ne, %10, %c0_i32_9 : i32
    scf.if %11 {
      %c0_10 = arith.constant 0 : index
      %c0_11 = arith.constant 0 : index
      %12 = vector.load %arg8[%c0_10, %c0_11] : memref<16x32xf32, #tpu.memory_space<vmem>>, vector<16x32xf32>
      %c0_12 = arith.constant 0 : index
      %c0_13 = arith.constant 0 : index
      %13 = vector.load %arg5[%c0_12, %c0_13] : memref<1x32xf32, #tpu.memory_space<vmem>>, vector<1x32xf32>
      %14 = vector.broadcast %13 : vector<1x32xf32> to vector<16x32xf32>
      %15 = arith.addf %12, %14 : vector<16x32xf32>
      %c0_14 = arith.constant 0 : index
      %c0_15 = arith.constant 0 : index
      %16 = vector.load %arg6[%c0_14, %c0_15] : memref<16x32xf32, #tpu.memory_space<vmem>>, vector<16x32xf32>
      %17 = arith.addf %15, %16 : vector<16x32xf32>
      %c0_16 = arith.constant 0 : index
      %c0_17 = arith.constant 0 : index
      %18 = vector.load %arg7[%c0_16, %c0_17] : memref<16x32xf32, #tpu.memory_space<vmem>>, vector<16x32xf32>
      tpu.vector_store %arg7[%c0_16, %c0_17], %17 {strides = array<i32>} : memref<16x32xf32, #tpu.memory_space<vmem>>, vector<16x32xf32>,
    } else {
    }
    return
  }
  func.func @transform_0(%arg0: i32, %arg1: i32, %arg2: i32) -> (i32, i32) {
    %c0_i32 = arith.constant 0 : i32
    return %arg0, %arg2 : i32, i32
  }
  func.func @transform_1(%arg0: i32, %arg1: i32, %arg2: i32) -> (i32, i32) {
    %c0_i32 = arith.constant 0 : i32
    return %arg2, %arg1 : i32, i32
  }
  func.func @transform_2(%arg0: i32, %arg1: i32, %arg2: i32) -> (i32, i32) {
    %c0_i32 = arith.constant 0 : i32
    %c0_i32_0 = arith.constant 0 : i32
    return %c0_i32, %arg1 : i32, i32
  }
  func.func @transform_3(%arg0: i32, %arg1: i32, %arg2: i32) -> (i32, i32) {
    %c0_i32 = arith.constant 0 : i32
    return %arg0, %arg1 : i32, i32
  }
  func.func @transform_4(%arg0: i32, %arg1: i32, %arg2: i32) -> (i32, i32) {
    %c0_i32 = arith.constant 0 : i32
    return %arg0, %arg1 : i32, i32
  }
}

</mosaic_0001>

<llo_original>
// kernel: transformer_forward.12
$region0: #{transformer_forward.12}
  #allocation0 [shape = 'u32[]', space=smem, size = 0x4, offset = 0x4, fixed_abs, tag = 'smem constant byte address 0x4 - core index']
  #allocation1 [shape = 'u32[144,128]{1,0:T(1,128)}', space=vmem, size = 0x12000, scoped, tag = 'internal scratch']
  #allocation2 [shape = 'f32[16,32]{1,0:T(8,128)}', space=vmem, size = 0x2000, scoped, tag = 'scratch operand']
  %s0 = inlined_call_operand.vmem [shape: bf16[16,32], index: 0, kind: input, shape index: {}]
  %s1 = inlined_call_operand.vmem [shape: bf16[32,32], index: 1, kind: input, shape index: {}]
  %s2 = inlined_call_operand.vmem [shape: f32[1,32], index: 2, kind: input, shape index: {}]
  %s3 = inlined_call_operand.vmem [shape: f32[16,32], index: 3, kind: input, shape index: {}]
  %s4 = inlined_call_operand.vmem [shape: f32[16,32], index: 4, kind: output, shape index: {}]
  %s5 = sld [smem:[#allocation0]]
  $region34: #{transformer_forward.12} parent=0
    _
  %s7 = ssub.s32 1, %s5
  %s8 = scalar_select 0, %s7, %s5
  // Predicated region
  $region2: #{transformer_forward.12} parent=0 // pred_check
    _
  $region3: #{transformer_forward.12} parent=0 // pred_check_branch
    %10 = sbr.rel (0) target = $region5
  $region4: #{transformer_forward.12} parent=0 // pred_region
    _
  $region5: #{transformer_forward.12} parent=0 // pred_fallthru
    _
  // Predicated region
  $region6: #{transformer_forward.12} parent=0 // pred_check
    _
  $region7: #{transformer_forward.12} parent=0 // pred_check_branch
    %12 = sbr.rel (0) target = $region9
  $region8: #{transformer_forward.12} parent=0 // pred_region
    _
  $region9: #{transformer_forward.12} parent=0 // pred_fallthru
    _
  // Predicated region
  $region10: #{transformer_forward.12} parent=0 // pred_check
    _
  $region11: #{transformer_forward.12} parent=0 // pred_check_branch
    %14 = sbr.rel (0) target = $region13
  $region12: #{transformer_forward.12} parent=0 // pred_region
    _
  $region13: #{transformer_forward.12} parent=0 // pred_fallthru
    _
  // Predicated region
  $region14: #{transformer_forward.12} parent=0 // pred_check
    _
  $region15: #{transformer_forward.12} parent=0 // pred_check_branch
    %16 = sbr.rel (0) target = $region17
  $region16: #{transformer_forward.12} parent=0 // pred_region
    _
  $region17: #{transformer_forward.12} parent=0 // pred_fallthru
    _
  %p18 = scmp.eq.s32.totalorder 0, 0
  // Predicated region
  $region18: #{transformer_forward.12} parent=0 // pred_check
    %p19 = pneg %p18
  $region19: #{transformer_forward.12} parent=0 // pred_check_branch
    %21 = sbr.rel (%p19) target = $region21
  $region20: #{transformer_forward.12} parent=0 // pred_region
    %vm22 = vcmask 261120
    %23 = vst.msk [vmem:[#allocation2] sm:$0xff] %vm22, 0.0
    %24 = vst.msk [vmem:[#allocation2 + $0x8] sm:$0xff] %vm22, 0.0
  $region21: #{transformer_forward.12} parent=0 // pred_fallthru
    _
  %v25 = vld [vmem:[#allocation2] sm:$0xff]
  %v26 = vld [vmem:[#allocation2 + $0x8] sm:$0xff]
  %v27 = vld [vmem:[%s0] sm:$0xf]
  %v28 = vld [vmem:[%s0 + $0x4] sm:$0xf]
  %v29 = vld [vmem:[%s1] sm:$0xf]
  %v30 = vld [vmem:[%s1 + $0x4] sm:$0xf]
  %v31 = vld [vmem:[%s1 + $0x8] sm:$0xf]
  %v32 = vld [vmem:[%s1 + $0xc] sm:$0xf]
  %v35 = vunpack.c.l.b16 %v27
  %v36 = vunpack.c.l.b16 %v28
  %v37 = vpack.c.b16 %v36, %v35
  %v42 = vunpack.c.l.b16 %v29
  %v43 = vunpack.c.l.b16 %v30
  %v44 = vunpack.c.l.b16 %v31
  %v45 = vunpack.c.l.b16 %v32
  %v46 = vpack.c.b16 %v43, %v42
  %v47 = vpack.c.b16 %v45, %v44
  %vm50 = vcmask 261120
  %v52 = vsel %vm50, %v37, 0
  %54 = vmatprep.subr.bf16.mxu0 0
  %55 = vmatpush1.bf16.msra.mxu0 %v46
  %56 = vmatprep.subr.bf16.mxu0 0
  %57 = vmatpush1.bf16.msra.mxu0 %v47
  %58 = vmatprep.subr.bf16.mxu0 0
  %59 = vmatpush1.bf16.msra.mxu0 0
  %60 = vmatprep.subr.bf16.mxu0 0
  %61 = vmatpush1.bf16.msra.mxu0 0
  %62 = vmatprep.subr.bf16.mxu0 0
  %63 = vmatpush1.bf16.msra.mxu0 0
  %64 = vmatprep.subr.bf16.mxu0 0
  %65 = vmatpush1.bf16.msra.mxu0 0
  %66 = vmatprep.subr.bf16.mxu0 0
  %67 = vmatpush1.bf16.msra.mxu0 0
  %68 = vmatprep.subr.bf16.mxu0 0
  %69 = vmatpush1.bf16.msra.mxu0 0
  %70 = vmatprep.subr.bf16.mxu0 0
  %71 = vmatpush1.bf16.msra.mxu0 0
  %72 = vmatprep.subr.bf16.mxu0 0
  %73 = vmatpush1.bf16.msra.mxu0 0
  %74 = vmatprep.subr.bf16.mxu0 0
  %75 = vmatpush1.bf16.msra.mxu0 0
  %76 = vmatprep.subr.bf16.mxu0 0
  %77 = vmatpush1.bf16.msra.mxu0 0
  %78 = vmatprep.subr.bf16.mxu0 0
  %79 = vmatpush1.bf16.msra.mxu0 0
  %80 = vmatprep.subr.bf16.mxu0 0
  %81 = vmatpush1.bf16.msra.mxu0 0
  %82 = vmatprep.subr.bf16.mxu0 0
  %83 = vmatpush1.bf16.msra.mxu0 0
  %84 = vmatprep.subr.bf16.mxu0 0
  %85 = vmatpush1.bf16.msra.mxu0 0
  %86 = vmatprep.mubr.bf16.mxu0 0
  %87 = vmatmul.mubr.bf16.gmra.mrb[0].mxu0 %v52
  %v88 = vpop.f32.mrb[0].mxu0
  %v89 = vadd.f32 0.0, %v88
  %v90 = vpop.f32.mrb[0].mxu0
  %v91 = vpop.f32.mrb[0].mxu0
  %v92 = vadd.f32 0.0, %v91
  %v93 = vpop.f32.mrb[0].mxu0
  %94 = vdwg.mxu0
  %v95 = vadd.f32 %v25, %v89
  %v96 = vadd.f32 %v26, %v92
  %97 = vst.msk [vmem:[#allocation2] sm:$0xff] %vm50, %v95
  %98 = vst.msk [vmem:[#allocation2 + $0x8] sm:$0xff] %vm50, %v96
  // Predicated region
  $region22: #{transformer_forward.12} parent=0 // pred_check
    %p99 = pneg %p18
  $region23: #{transformer_forward.12} parent=0 // pred_check_branch
    %101 = sbr.rel (%p99) target = $region25
  $region24: #{transformer_forward.12} parent=0 // pred_region
    %v102 = vld [vmem:[#allocation2] sm:$0xff]
    %v103 = vld [vmem:[#allocation2 + $0x8] sm:$0xff]
    %v104 = vld [vmem:[%s2] sm:$0x1]
    %v106 = vlaneseq
    %v107 = vshrl.u32 %v106, 7
    %v108 = vsub.s32 0, %v107
    %v109 = vrot.slane %v104, %v108
    %v111 = vadd.f32 %v102, %v109
    %v112 = vadd.f32 %v103, %v109
    %v113 = vld [vmem:[%s3] sm:$0xff]
    %v114 = vld [vmem:[%s3 + $0x8] sm:$0xff]
    %v115 = vadd.f32 %v111, %v113
    %v116 = vadd.f32 %v112, %v114
    %117 = vst.msk [vmem:[%s4] sm:$0xff] %vm50, %v115
    %118 = vst.msk [vmem:[%s4 + $0x8] sm:$0xff] %vm50, %v116
  $region25: #{transformer_forward.12} parent=0 // pred_fallthru
    _
  // Predicated region
  $region26: #{transformer_forward.12} parent=0 // pred_check
    _
  $region27: #{transformer_forward.12} parent=0 // pred_check_branch
    %120 = sbr.rel (0) target = $region29
  $region28: #{transformer_forward.12} parent=0 // pred_region
    _
  $region29: #{transformer_forward.12} parent=0 // pred_fallthru
    _
  // Predicated region
  $region30: #{transformer_forward.12} parent=0 // pred_check
    _
  $region31: #{transformer_forward.12} parent=0 // pred_check_branch
    %122 = sbr.rel (0) target = $region33
  $region32: #{transformer_forward.12} parent=0 // pred_region
    _
  $region33: #{transformer_forward.12} parent=0 // pred_fallthru
    _

// kernel: transformer_forward.10
$region0: #{transformer_forward.10}
  #allocation0 [shape = 'u32[]', space=smem, size = 0x4, offset = 0x4, fixed_abs, tag = 'smem constant byte address 0x4 - core index']
  #allocation1 [shape = 'u32[144,128]{1,0:T(1,128)}', space=vmem, size = 0x12000, scoped, tag = 'internal scratch']
  #allocation2 [shape = 'bf16[16,32]{1,0:T(16,128)(2,1)}', space=vmem, size = 0x1000, scoped, tag = 'scratch operand']
  %s0 = inlined_call_operand.vmem [shape: f32[16,32], index: 0, kind: input, shape index: {}]
  %s1 = inlined_call_operand.vmem [shape: f32[1,32], index: 1, kind: input, shape index: {}]
  %s2 = inlined_call_operand.vmem [shape: f32[1,32], index: 2, kind: input, shape index: {}]
  %s3 = inlined_call_operand.vmem [shape: bf16[32,96], index: 3, kind: input, shape index: {}]
  %s4 = inlined_call_operand.vmem [shape: f32[1,96], index: 4, kind: input, shape index: {}]
  %s5 = inlined_call_operand.vmem [shape: bf16[16,96], index: 5, kind: output, shape index: {}]
  %s6 = sld [smem:[#allocation0]]
  $region34: #{transformer_forward.10} parent=0
    _
  %s8 = ssub.s32 1, %s6
  %s9 = scalar_select 0, %s8, %s6
  // Predicated region
  $region2: #{transformer_forward.10} parent=0 // pred_check
    _
  $region3: #{transformer_forward.10} parent=0 // pred_check_branch
    %11 = sbr.rel (0) target = $region5
  $region4: #{transformer_forward.10} parent=0 // pred_region
    _
  $region5: #{transformer_forward.10} parent=0 // pred_fallthru
    _
  // Predicated region
  $region6: #{transformer_forward.10} parent=0 // pred_check
    _
  $region7: #{transformer_forward.10} parent=0 // pred_check_branch
    %13 = sbr.rel (0) target = $region9
  $region8: #{transformer_forward.10} parent=0 // pred_region
    _
  $region9: #{transformer_forward.10} parent=0 // pred_fallthru
    _
  // Predicated region
  $region10: #{transformer_forward.10} parent=0 // pred_check
    _
  $region11: #{transformer_forward.10} parent=0 // pred_check_branch
    %15 = sbr.rel (0) target = $region13
  $region12: #{transformer_forward.10} parent=0 // pred_region
    _
  $region13: #{transformer_forward.10} parent=0 // pred_fallthru
    _
  // Predicated region
  $region14: #{transformer_forward.10} parent=0 // pred_check
    _
  $region15: #{transformer_forward.10} parent=0 // pred_check_branch
    %17 = sbr.rel (0) target = $region17
  $region16: #{transformer_forward.10} parent=0 // pred_region
    _
  $region17: #{transformer_forward.10} parent=0 // pred_fallthru
    _
  // Predicated region
  $region18: #{transformer_forward.10} parent=0 // pred_check
    _
  $region19: #{transformer_forward.10} parent=0 // pred_check_branch
    %19 = sbr.rel (0) target = $region21
  $region20: #{transformer_forward.10} parent=0 // pred_region
    _
  $region21: #{transformer_forward.10} parent=0 // pred_fallthru
    _
  %p21 = scmp.eq.s32.totalorder 0, 0
  // Predicated region
  $region22: #{transformer_forward.10} parent=0 // pred_check
    %p22 = pneg %p21
  $region23: #{transformer_forward.10} parent=0 // pred_check_branch
    %24 = sbr.rel (%p22) target = $region25
  $region24: #{transformer_forward.10} parent=0 // pred_region
    %v25 = vld [vmem:[%s0] sm:$0xff]
    %v26 = vld [vmem:[%s0 + $0x8] sm:$0xff]
    %vm27 = vcmask 261120
    %v28 = vsel %vm27, %v25, 0.0
    %29 = vadd.xlane.f32.xlu0 %v28
    %v30 = vpop.xlane.xlu0 %29
    %v31 = vsel %vm27, %v26, 0.0
    %32 = vadd.xlane.f32.xlu0 %v31
    %v33 = vpop.xlane.xlu0 %32
    %v34 = vrcp.pop 32.0
    %v35 = vmul.f32 %v30, %v34
    %v36 = vmul.f32 %v33, %v34
    %v37 = vsub.f32 %v25, %v35
    %v38 = vsub.f32 %v26, %v36
    %v39 = vmul.f32 %v37, %v37
    %v40 = vmul.f32 %v38, %v38
    %v41 = vsel %vm27, %v39, 0.0
    %42 = vadd.xlane.f32.xlu0 %v41
    %v43 = vpop.xlane.xlu0 %42
    %v44 = vsel %vm27, %v40, 0.0
    %45 = vadd.xlane.f32.xlu0 %v44
    %v46 = vpop.xlane.xlu0 %45
    %v47 = vmul.f32 %v43, %v34
    %v48 = vmul.f32 %v46, %v34
    %v49 = vadd.f32 %v47, 1e-05
    %v50 = vadd.f32 %v48, 1e-05
    %v51 = vrsqrt.pop %v49
    %v52 = vrsqrt.pop %v50
    %v53 = vmul.f32 %v37, %v51
    %v54 = vmul.f32 %v38, %v52
    %v55 = vld [vmem:[%s1] sm:$0x1]
    %v57 = vlaneseq
    %v58 = vshrl.u32 %v57, 7
    %v59 = vsub.s32 0, %v58
    %v60 = vrot.slane %v55, %v59
    %v62 = vmul.f32 %v53, %v60
    %v63 = vmul.f32 %v54, %v60
    %v64 = vld [vmem:[%s2] sm:$0x1]
    %v66 = vlaneseq
    %v67 = vshrl.u32 %v66, 7
    %v68 = vsub.s32 0, %v67
    %v69 = vrot.slane %v64, %v68
    %v71 = vadd.f32 %v62, %v69
    %v72 = vadd.f32 %v63, %v69
    %v73 = vpack.c.bf16 %v72, %v71
    %74 = vst.msk [vmem:[#allocation2] sm:$0xff] %vm27, %v73
  $region25: #{transformer_forward.10} parent=0 // pred_fallthru
    _
  %v75 = vld [vmem:[#allocation2] sm:$0xff]
  %v76 = vld [vmem:[%s3] sm:$0xf]
  %v77 = vld [vmem:[%s3 + $0x4] sm:$0xf]
  %v78 = vld [vmem:[%s3 + $0x8] sm:$0xf]
  %v79 = vld [vmem:[%s3 + $0xc] sm:$0xf]
  %v80 = vld [vmem:[%s4] sm:$0x1]
  %v82 = vlaneseq
  %v83 = vshrl.u32 %v82, 7
  %v84 = vsub.s32 0, %v83
  %v85 = vrot.slane %v80, %v84
  %v91 = vunpack.c.l.b16 %v76
  %v92 = vunpack.c.l.b16 %v77
  %v93 = vunpack.c.l.b16 %v78
  %v94 = vunpack.c.l.b16 %v79
  %v95 = vpack.c.b16 %v92, %v91
  %v96 = vpack.c.b16 %v94, %v93
  %vm99 = vcmask 261120
  %v101 = vsel %vm99, %v75, 0
  %103 = vmatprep.subr.bf16.mxu0 0
  %104 = vmatpush1.bf16.msra.mxu0 %v95
  %105 = vmatprep.subr.bf16.mxu0 0
  %106 = vmatpush1.bf16.msra.mxu0 %v96
  %107 = vmatprep.subr.bf16.mxu0 0
  %108 = vmatpush1.bf16.msra.mxu0 0
  %109 = vmatprep.subr.bf16.mxu0 0
  %110 = vmatpush1.bf16.msra.mxu0 0
  %111 = vmatprep.subr.bf16.mxu0 0
  %112 = vmatpush1.bf16.msra.mxu0 0
  %113 = vmatprep.subr.bf16.mxu0 0
  %114 = vmatpush1.bf16.msra.mxu0 0
  %115 = vmatprep.subr.bf16.mxu0 0
  %116 = vmatpush1.bf16.msra.mxu0 0
  %117 = vmatprep.subr.bf16.mxu0 0
  %118 = vmatpush1.bf16.msra.mxu0 0
  %119 = vmatprep.subr.bf16.mxu0 0
  %120 = vmatpush1.bf16.msra.mxu0 0
  %121 = vmatprep.subr.bf16.mxu0 0
  %122 = vmatpush1.bf16.msra.mxu0 0
  %123 = vmatprep.subr.bf16.mxu0 0
  %124 = vmatpush1.bf16.msra.mxu0 0
  %125 = vmatprep.subr.bf16.mxu0 0
  %126 = vmatpush1.bf16.msra.mxu0 0
  %127 = vmatprep.subr.bf16.mxu0 0
  %128 = vmatpush1.bf16.msra.mxu0 0
  %129 = vmatprep.subr.bf16.mxu0 0
  %130 = vmatpush1.bf16.msra.mxu0 0
  %131 = vmatprep.subr.bf16.mxu0 0
  %132 = vmatpush1.bf16.msra.mxu0 0
  %133 = vmatprep.subr.bf16.mxu0 0
  %134 = vmatpush1.bf16.msra.mxu0 0
  %135 = vmatprep.mubr.bf16.mxu0 0
  %136 = vmatmul.mubr.bf16.gmra.mrb[0].mxu0 %v101
  %v137 = vpop.f32.mrb[0].mxu0
  %v138 = vadd.f32 %v85, %v137
  %v139 = vpop.f32.mrb[0].mxu0
  %v140 = vpop.f32.mrb[0].mxu0
  %v141 = vadd.f32 %v85, %v140
  %v142 = vpop.f32.mrb[0].mxu0
  %143 = vdwg.mxu0
  %v144 = vpack.c.bf16 %v141, %v138
  %v146 = vunpack.c.l.b16 %v144
  %v147 = vunpack.c.h.b16 %v144
  %v148 = vpack.c.b16 %v146, %v146
  %v149 = vpack.c.b16 %v147, %v147
  %vm152 = vcmask 781312
  %153 = vst.msk [vmem:[%s5] sm:$0xf] %vm152, %v148
  %154 = vst.msk [vmem:[%s5 + $0x4] sm:$0xf] %vm152, %v149
  // Predicated region
  $region26: #{transformer_forward.10} parent=0 // pred_check
    _
  $region27: #{transformer_forward.10} parent=0 // pred_check_branch
    %156 = sbr.rel (0) target = $region29
  $region28: #{transformer_forward.10} parent=0 // pred_region
    _
  $region29: #{transformer_forward.10} parent=0 // pred_fallthru
    _
  // Predicated region
  $region30: #{transformer_forward.10} parent=0 // pred_check
    _
  $region31: #{transformer_forward.10} parent=0 // pred_check_branch
    %158 = sbr.rel (0) target = $region33
  $region32: #{transformer_forward.10} parent=0 // pred_region
    _
  $region33: #{transformer_forward.10} parent=0 // pred_fallthru
    _

// kernel: transformer_forward.11
$region0: #{transformer_forward.11}
  #allocation0 [shape = 'u32[]', space=smem, size = 0x4, offset = 0x4, fixed_abs, tag = 'smem constant byte address 0x4 - core index']
  #allocation1 [shape = 'u32[144,128]{1,0:T(1,128)}', space=vmem, size = 0x12000, scoped, tag = 'internal scratch']
  %s0 = inlined_call_operand.vmem [shape: bf16[2,8,96], index: 0, kind: input, shape index: {}]
  %s1 = inlined_call_operand.vmem [shape: bf16[2,8,32], index: 1, kind: output, shape index: {}]
  %s2 = sld [smem:[#allocation0]]
  $region37: #{transformer_forward.11} parent=0
    _
  %s4 = ssub.s32 1, %s2
  %s5 = scalar_select 0, %s4, %s2
  loop: start=0, step=1, limit=4
  $region2: #{transformer_forward.11} parent=0 // loop_pre_header
    _
  $region3: #{transformer_forward.11} parent=0 // loop_header
    %s7 = sphi 0, %s11
    %p8 = scmp.ge.s32.totalorder %s7, 4
    %s17 = sphi 0, %s19
    %s20 = sphi 0, %s17
    %s21 = sphi 0, %s20
    %s37 = sphi 0, %s21
    %s43 = sphi 0, %s45
    %s46 = sphi 0, %s43
    %s47 = sphi 0, %s46
    %s63 = sphi 0, %s47
  $region4: #{transformer_forward.11} parent=0 // loop_header_branch
    %10 = sbr.rel (%p8) target = $region8
  $region5: #{transformer_forward.11} parent=0 // loop_body
    %s12 = ssub.s32 %s7, 1
    %s13 = ssub.s32 %s7, 2
    %s14 = sadd.s32 %s7, 1
    %s15 = ssub.s32 %s7, %s14
    %p16 = scmp.eq.s32.totalorder %s15, 0
    %s18 = sadd.s32 %s17, 1
    %s19 = scalar_select %p16, %s17, %s18
    %p22 = pneg %p16
    %p23 = scmp.eq.s32.totalorder %s7, 1
    %p24 = por %p22, %p23
    %p25 = scmp.ne.s32.totalorder %s17, %s20
    %p26 = scmp.eq.s32.totalorder %s7, 0
    %p27 = por %p25, %p26
    %p28 = scmp.ne.s32.totalorder %s17, %s20
    %p29 = scmp.eq.s32.totalorder %s12, 1
    %p30 = por %p28, %p29
    %p31 = scmp.ne.s32.totalorder %s20, %s21
    %p32 = scmp.eq.s32.totalorder %s12, 0
    %p33 = por %p31, %p32
    %p34 = scmp.ne.s32.totalorder %s20, %s21
    %p35 = scmp.eq.s32.totalorder %s13, 1
    %p36 = por %p34, %p35
    %p38 = scmp.ne.s32.totalorder %s21, %s37
    %p39 = scmp.eq.s32.totalorder %s13, 0
    %p40 = por %p38, %p39
    %s41 = ssub.s32 %s7, %s14
    %p42 = scmp.eq.s32.totalorder %s41, 0
    %s44 = sadd.s32 %s43, 1
    %s45 = scalar_select %p42, %s43, %s44
    %p48 = pneg %p42
    %p49 = scmp.eq.s32.totalorder %s7, 1
    %p50 = por %p48, %p49
    %p51 = scmp.ne.s32.totalorder %s43, %s46
    %p52 = scmp.eq.s32.totalorder %s7, 0
    %p53 = por %p51, %p52
    %p54 = scmp.ne.s32.totalorder %s43, %s46
    %p55 = scmp.eq.s32.totalorder %s12, 1
    %p56 = por %p54, %p55
    %p57 = scmp.ne.s32.totalorder %s46, %s47
    %p58 = scmp.eq.s32.totalorder %s12, 0
    %p59 = por %p57, %p58
    %p60 = scmp.ne.s32.totalorder %s46, %s47
    %p61 = scmp.eq.s32.totalorder %s13, 1
    %p62 = por %p60, %p61
    %p64 = scmp.ne.s32.totalorder %s47, %s63
    %p65 = scmp.eq.s32.totalorder %s13, 0
    %p66 = por %p64, %p65
    %p67 = scmp.le.s32.totalorder 1, %s7
    %p68 = scmp.lt.s32.totalorder %s7, 3
    %p69 = pnand %p67, %p68
    %p70 = pneg %p69
    // Predicated region
    $region9: #{transformer_forward.11} parent=5 // pred_check
      _
    $region10: #{transformer_forward.11} parent=5 // pred_check_branch
      %72 = sbr.rel (%p69) target = $region12
    $region11: #{transformer_forward.11} parent=5 // pred_region
      %s73 = ssub.s32 %s7, 1
    $region12: #{transformer_forward.11} parent=5 // pred_fallthru
      _
    %p74 = scmp.lt.s32.totalorder %s7, 2
    // Predicated region
    $region13: #{transformer_forward.11} parent=5 // pred_check
      %p75 = pneg %p74
    $region14: #{transformer_forward.11} parent=5 // pred_check_branch
      %77 = sbr.rel (%p75) target = $region16
    $region15: #{transformer_forward.11} parent=5 // pred_region
      // Predicated region
      $region17: #{transformer_forward.11} parent=15 // pred_check
        %p78 = pneg %p27
      $region18: #{transformer_forward.11} parent=15 // pred_check_branch
        %80 = sbr.rel (%p78) target = $region20
      $region19: #{transformer_forward.11} parent=15 // pred_region
        %p81 = scmp.lt.s32.totalorder %s7, 1
        %s82 = scalar_select %p81, %s7, 1
        %s83 = smul.addr %s82, 4
        %s84 = scalar_lea.vmem %s0, %s83
      $region20: #{transformer_forward.11} parent=15 // pred_fallthru
        _
    $region16: #{transformer_forward.11} parent=5 // pred_fallthru
      _
    %p85 = scmp.le.s32.totalorder 1, %s7
    %p86 = scmp.lt.s32.totalorder %s7, 3
    %p87 = pnand %p85, %p86
    %p88 = pneg %p87
    // Predicated region
    $region21: #{transformer_forward.11} parent=5 // pred_check
      _
    $region22: #{transformer_forward.11} parent=5 // pred_check_branch
      %90 = sbr.rel (%p87) target = $region24
    $region23: #{transformer_forward.11} parent=5 // pred_region
      %s91 = ssub.s32 %s7, 1
      %p92 = scmp.lt.s32.totalorder %s12, 1
      %s93 = scalar_select %p92, %s12, 1
      %s94 = smul.addr %s93, 4
      %s95 = scalar_lea.vmem %s0, %s94
      %p96 = pneg %p33
      %p97 = pneg %p30
      %p98 = pneg %p59
      %p99 = pneg %p56
      %p100 = scmp.lt.s32.totalorder %s12, 1
      %s101 = scalar_select %p100, %s12, 1
      %s102 = smul.addr %s101, 4
      %s103 = scalar_lea.vmem %s1, %s102
      %p104 = scmp.lt.s32.totalorder %s12, 1
      %s105 = scalar_select %p104, %s12, 1
      %s106 = smul.addr %s105, 4
      %s107 = scalar_lea.vmem %s0, %s106
      %p108 = scmp.lt.s32.totalorder %s12, 1
      %s109 = scalar_select %p108, %s12, 1
      %s110 = smul.addr %s109, 4
      %s111 = scalar_lea.vmem %s1, %s110
      %v113 = vld [vmem:[%s107] sm:$0xf]
      %v115 = vunpack.c.l.b16 %v113
      %v116 = vpack.c.b16 %v115, %v115
      %117 = vrot.lane.b32.xlu0 %v116, 96
      %v118 = vpop.permute.xlu0 %117
      %vm119 = vcmask 64512
      %v121 = vsel %vm119, %v113, 0
      %v124 = vsel %vm119, %v118, 0
      %126 = vmatprep.subr.bf16.mxu0 0
      %127 = vmatpush1.bf16.xpose.msra.mxu0 %v124
      %128 = vmatprep.subr.bf16.mxu0 0
      %129 = vmatpush1.bf16.xpose.msra.mxu0 0
      %130 = vmatprep.subr.bf16.mxu0 0
      %131 = vmatpush1.bf16.xpose.msra.mxu0 0
      %132 = vmatprep.subr.bf16.mxu0 0
      %133 = vmatpush1.bf16.xpose.msra.mxu0 0
      %134 = vmatprep.subr.bf16.mxu0 0
      %135 = vmatpush1.bf16.xpose.msra.mxu0 0
      %136 = vmatprep.subr.bf16.mxu0 0
      %137 = vmatpush1.bf16.xpose.msra.mxu0 0
      %138 = vmatprep.subr.bf16.mxu0 0
      %139 = vmatpush1.bf16.xpose.msra.mxu0 0
      %140 = vmatprep.subr.bf16.mxu0 0
      %141 = vmatpush1.bf16.xpose.msra.mxu0 0
      %142 = vmatprep.subr.bf16.mxu0 0
      %143 = vmatpush1.bf16.xpose.msra.mxu0 0
      %144 = vmatprep.subr.bf16.mxu0 0
      %145 = vmatpush1.bf16.xpose.msra.mxu0 0
      %146 = vmatprep.subr.bf16.mxu0 0
      %147 = vmatpush1.bf16.xpose.msra.mxu0 0
      %148 = vmatprep.subr.bf16.mxu0 0
      %149 = vmatpush1.bf16.xpose.msra.mxu0 0
      %150 = vmatprep.subr.bf16.mxu0 0
      %151 = vmatpush1.bf16.xpose.msra.mxu0 0
      %152 = vmatprep.subr.bf16.mxu0 0
      %153 = vmatpush1.bf16.xpose.msra.mxu0 0
      %154 = vmatprep.subr.bf16.mxu0 0
      %155 = vmatpush1.bf16.xpose.msra.mxu0 0
      %156 = vmatprep.subr.bf16.mxu0 0
      %157 = vmatpush1.bf16.xpose.msra.mxu0 0
      %158 = vmatprep.mubr.bf16.mxu0 0
      %159 = vmatmul.mubr.bf16.gmra.mrb[0].mxu0 %v121
      %v160 = vpop.f32.mrb[0].mxu0
      %v161 = vadd.f32 0.0, %v160
      %v162 = vpop.f32.mrb[0].mxu0
      %v163 = vpop.f32.mrb[0].mxu0
      %v164 = vpop.f32.mrb[0].mxu0
      %165 = vdwg.mxu0
      %v166 = vmul.f32 %v161, 0.35355338
      %v167 = vsel %vm119, %v166, -inf
      %168 = vmax.xlane.f32.xlu0 %v167
      %v169 = vpop.xlane.xlu0 %168
      %v170 = vsub.f32 %v166, %v169
      %v171 = vmul.f32 %v170, 1.442695
      %v172 = vpow.pop %v171
      %v173 = vsel %vm119, %v172, 0.0
      %174 = vadd.xlane.f32.xlu0 %v173
      %v175 = vpop.xlane.xlu0 %174
      %v176 = vrcp.pop %v175
      %v177 = vmul.f32 %v172, %v176
      %v178 = vpack.c.bf16 %v177, %v177
      %179 = vrot.lane.b32.xlu0 %v116, 64
      %v180 = vpop.permute.xlu0 %179
      %v182 = vsel %vm119, %v178, 0
      %vm184 = vcmask 1043456
      %v186 = vsel %vm184, %v180, 0
      %188 = vmatprep.subr.bf16.mxu0 0
      %189 = vmatpush1.bf16.msra.mxu0 %v186
      %190 = vmatprep.subr.bf16.mxu0 0
      %191 = vmatpush1.bf16.msra.mxu0 0
      %192 = vmatprep.subr.bf16.mxu0 0
      %193 = vmatpush1.bf16.msra.mxu0 0
      %194 = vmatprep.subr.bf16.mxu0 0
      %195 = vmatpush1.bf16.msra.mxu0 0
      %196 = vmatprep.subr.bf16.mxu0 0
      %197 = vmatpush1.bf16.msra.mxu0 0
      %198 = vmatprep.subr.bf16.mxu0 0
      %199 = vmatpush1.bf16.msra.mxu0 0
      %200 = vmatprep.subr.bf16.mxu0 0
      %201 = vmatpush1.bf16.msra.mxu0 0
      %202 = vmatprep.subr.bf16.mxu0 0
      %203 = vmatpush1.bf16.msra.mxu0 0
      %204 = vmatprep.subr.bf16.mxu0 0
      %205 = vmatpush1.bf16.msra.mxu0 0
      %206 = vmatprep.subr.bf16.mxu0 0
      %207 = vmatpush1.bf16.msra.mxu0 0
      %208 = vmatprep.subr.bf16.mxu0 0
      %209 = vmatpush1.bf16.msra.mxu0 0
      %210 = vmatprep.subr.bf16.mxu0 0
      %211 = vmatpush1.bf16.msra.mxu0 0
      %212 = vmatprep.subr.bf16.mxu0 0
      %213 = vmatpush1.bf16.msra.mxu0 0
      %214 = vmatprep.subr.bf16.mxu0 0
      %215 = vmatpush1.bf16.msra.mxu0 0
      %216 = vmatprep.subr.bf16.mxu0 0
      %217 = vmatpush1.bf16.msra.mxu0 0
      %218 = vmatprep.subr.bf16.mxu0 0
      %219 = vmatpush1.bf16.msra.mxu0 0
      %220 = vmatprep.mubr.bf16.mxu0 0
      %221 = vmatmul.mubr.bf16.gmra.mrb[0].mxu0 %v182
      %v222 = vpop.f32.mrb[0].mxu0
      %v223 = vadd.f32 0.0, %v222
      %v224 = vpop.f32.mrb[0].mxu0
      %v225 = vpop.f32.mrb[0].mxu0
      %v226 = vpop.f32.mrb[0].mxu0
      %227 = vdwg.mxu0
      %v228 = vpack.c.bf16 %v223, %v223
      %vm229 = vcmask 60416
      %230 = vst.msk [vmem:[%s111] sm:$0xf] %vm229, %v228
      %231 = vrot.lane.b32.xlu0 %v116, 120
      %v232 = vpop.permute.xlu0 %231
      %233 = vrot.lane.b32.xlu0 %v116, 88
      %v234 = vpop.permute.xlu0 %233
      %v236 = vsel %vm119, %v232, 0
      %v239 = vsel %vm119, %v234, 0
      %241 = vmatprep.subr.bf16.mxu0 0
      %242 = vmatpush1.bf16.xpose.msra.mxu0 %v239
      %243 = vmatprep.subr.bf16.mxu0 0
      %244 = vmatpush1.bf16.xpose.msra.mxu0 0
      %245 = vmatprep.subr.bf16.mxu0 0
      %246 = vmatpush1.bf16.xpose.msra.mxu0 0
      %247 = vmatprep.subr.bf16.mxu0 0
      %248 = vmatpush1.bf16.xpose.msra.mxu0 0
      %249 = vmatprep.subr.bf16.mxu0 0
      %250 = vmatpush1.bf16.xpose.msra.mxu0 0
      %251 = vmatprep.subr.bf16.mxu0 0
      %252 = vmatpush1.bf16.xpose.msra.mxu0 0
      %253 = vmatprep.subr.bf16.mxu0 0
      %254 = vmatpush1.bf16.xpose.msra.mxu0 0
      %255 = vmatprep.subr.bf16.mxu0 0
      %256 = vmatpush1.bf16.xpose.msra.mxu0 0
      %257 = vmatprep.subr.bf16.mxu0 0
      %258 = vmatpush1.bf16.xpose.msra.mxu0 0
      %259 = vmatprep.subr.bf16.mxu0 0
      %260 = vmatpush1.bf16.xpose.msra.mxu0 0
      %261 = vmatprep.subr.bf16.mxu0 0
      %262 = vmatpush1.bf16.xpose.msra.mxu0 0
      %263 = vmatprep.subr.bf16.mxu0 0
      %264 = vmatpush1.bf16.xpose.msra.mxu0 0
      %265 = vmatprep.subr.bf16.mxu0 0
      %266 = vmatpush1.bf16.xpose.msra.mxu0 0
      %267 = vmatprep.subr.bf16.mxu0 0
      %268 = vmatpush1.bf16.xpose.msra.mxu0 0
      %269 = vmatprep.subr.bf16.mxu0 0
      %270 = vmatpush1.bf16.xpose.msra.mxu0 0
      %271 = vmatprep.subr.bf16.mxu0 0
      %272 = vmatpush1.bf16.xpose.msra.mxu0 0
      %273 = vmatprep.mubr.bf16.mxu0 0
      %274 = vmatmul.mubr.bf16.gmra.mrb[0].mxu0 %v236
      %v275 = vpop.f32.mrb[0].mxu0
      %v276 = vadd.f32 0.0, %v275
      %v277 = vpop.f32.mrb[0].mxu0
      %v278 = vpop.f32.mrb[0].mxu0
      %v279 = vpop.f32.mrb[0].mxu0
      %280 = vdwg.mxu0
      %v281 = vmul.f32 %v276, 0.35355338
      %v282 = vsel %vm119, %v281, -inf
      %283 = vmax.xlane.f32.xlu0 %v282
      %v284 = vpop.xlane.xlu0 %283
      %v285 = vsub.f32 %v281, %v284
      %v286 = vmul.f32 %v285, 1.442695
      %v287 = vpow.pop %v286
      %v288 = vsel %vm119, %v287, 0.0
      %289 = vadd.xlane.f32.xlu0 %v288
      %v290 = vpop.xlane.xlu0 %289
      %v291 = vrcp.pop %v290
      %v292 = vmul.f32 %v287, %v291
      %v293 = vpack.c.bf16 %v292, %v292
      %294 = vrot.lane.b32.xlu0 %v116, 56
      %v295 = vpop.permute.xlu0 %294
      %v297 = vsel %vm119, %v293, 0
      %v300 = vsel %vm184, %v295, 0
      %302 = vmatprep.subr.bf16.mxu0 0
      %303 = vmatpush1.bf16.msra.mxu0 %v300
      %304 = vmatprep.subr.bf16.mxu0 0
      %305 = vmatpush1.bf16.msra.mxu0 0
      %306 = vmatprep.subr.bf16.mxu0 0
      %307 = vmatpush1.bf16.msra.mxu0 0
      %308 = vmatprep.subr.bf16.mxu0 0
      %309 = vmatpush1.bf16.msra.mxu0 0
      %310 = vmatprep.subr.bf16.mxu0 0
      %311 = vmatpush1.bf16.msra.mxu0 0
      %312 = vmatprep.subr.bf16.mxu0 0
      %313 = vmatpush1.bf16.msra.mxu0 0
      %314 = vmatprep.subr.bf16.mxu0 0
      %315 = vmatpush1.bf16.msra.mxu0 0
      %316 = vmatprep.subr.bf16.mxu0 0
      %317 = vmatpush1.bf16.msra.mxu0 0
      %318 = vmatprep.subr.bf16.mxu0 0
      %319 = vmatpush1.bf16.msra.mxu0 0
      %320 = vmatprep.subr.bf16.mxu0 0
      %321 = vmatpush1.bf16.msra.mxu0 0
      %322 = vmatprep.subr.bf16.mxu0 0
      %323 = vmatpush1.bf16.msra.mxu0 0
      %324 = vmatprep.subr.bf16.mxu0 0
      %325 = vmatpush1.bf16.msra.mxu0 0
      %326 = vmatprep.subr.bf16.mxu0 0
      %327 = vmatpush1.bf16.msra.mxu0 0
      %328 = vmatprep.subr.bf16.mxu0 0
      %329 = vmatpush1.bf16.msra.mxu0 0
      %330 = vmatprep.subr.bf16.mxu0 0
      %331 = vmatpush1.bf16.msra.mxu0 0
      %332 = vmatprep.subr.bf16.mxu0 0
      %333 = vmatpush1.bf16.msra.mxu0 0
      %334 = vmatprep.mubr.bf16.mxu0 0
      %335 = vmatmul.mubr.bf16.gmra.mrb[0].mxu0 %v297
      %v336 = vpop.f32.mrb[0].mxu0
      %v337 = vadd.f32 0.0, %v336
      %v338 = vpop.f32.mrb[0].mxu0
      %v339 = vpop.f32.mrb[0].mxu0
      %v340 = vpop.f32.mrb[0].mxu0
      %341 = vdwg.mxu0
      %v342 = vpack.c.bf16 %v337, %v337
      %v344 = vunpack.c.l.b16 %v342
      %v345 = vpack.c.b16 %v344, %v344
      %346 = vrot.lane.b32.xlu0 %v345, 8
      %v347 = vpop.permute.xlu0 %346
      %vm349 = vcmask 126016
      %350 = vst.msk [vmem:[%s111] sm:$0xf] %vm349, %v347
      %351 = vrot.lane.b32.xlu0 %v116, 112
      %v352 = vpop.permute.xlu0 %351
      %353 = vrot.lane.b32.xlu0 %v116, 80
      %v354 = vpop.permute.xlu0 %353
      %v356 = vsel %vm119, %v352, 0
      %v359 = vsel %vm119, %v354, 0
      %361 = vmatprep.subr.bf16.mxu0 0
      %362 = vmatpush1.bf16.xpose.msra.mxu0 %v359
      %363 = vmatprep.subr.bf16.mxu0 0
      %364 = vmatpush1.bf16.xpose.msra.mxu0 0
      %365 = vmatprep.subr.bf16.mxu0 0
      %366 = vmatpush1.bf16.xpose.msra.mxu0 0
      %367 = vmatprep.subr.bf16.mxu0 0
      %368 = vmatpush1.bf16.xpose.msra.mxu0 0
      %369 = vmatprep.subr.bf16.mxu0 0
      %370 = vmatpush1.bf16.xpose.msra.mxu0 0
      %371 = vmatprep.subr.bf16.mxu0 0
      %372 = vmatpush1.bf16.xpose.msra.mxu0 0
      %373 = vmatprep.subr.bf16.mxu0 0
      %374 = vmatpush1.bf16.xpose.msra.mxu0 0
      %375 = vmatprep.subr.bf16.mxu0 0
      %376 = vmatpush1.bf16.xpose.msra.mxu0 0
      %377 = vmatprep.subr.bf16.mxu0 0
      %378 = vmatpush1.bf16.xpose.msra.mxu0 0
      %379 = vmatprep.subr.bf16.mxu0 0
      %380 = vmatpush1.bf16.xpose.msra.mxu0 0
      %381 = vmatprep.subr.bf16.mxu0 0
      %382 = vmatpush1.bf16.xpose.msra.mxu0 0
      %383 = vmatprep.subr.bf16.mxu0 0
      %384 = vmatpush1.bf16.xpose.msra.mxu0 0
      %385 = vmatprep.subr.bf16.mxu0 0
      %386 = vmatpush1.bf16.xpose.msra.mxu0 0
      %387 = vmatprep.subr.bf16.mxu0 0
      %388 = vmatpush1.bf16.xpose.msra.mxu0 0
      %389 = vmatprep.subr.bf16.mxu0 0
      %390 = vmatpush1.bf16.xpose.msra.mxu0 0
      %391 = vmatprep.subr.bf16.mxu0 0
      %392 = vmatpush1.bf16.xpose.msra.mxu0 0
      %393 = vmatprep.mubr.bf16.mxu0 0
      %394 = vmatmul.mubr.bf16.gmra.mrb[0].mxu0 %v356
      %v395 = vpop.f32.mrb[0].mxu0
      %v396 = vadd.f32 0.0, %v395
      %v397 = vpop.f32.mrb[0].mxu0
      %v398 = vpop.f32.mrb[0].mxu0
      %v399 = vpop.f32.mrb[0].mxu0
      %400 = vdwg.mxu0
      %v401 = vmul.f32 %v396, 0.35355338
      %v402 = vsel %vm119, %v401, -inf
      %403 = vmax.xlane.f32.xlu0 %v402
      %v404 = vpop.xlane.xlu0 %403
      %v405 = vsub.f32 %v401, %v404
      %v406 = vmul.f32 %v405, 1.442695
      %v407 = vpow.pop %v406
      %v408 = vsel %vm119, %v407, 0.0
      %409 = vadd.xlane.f32.xlu0 %v408
      %v410 = vpop.xlane.xlu0 %409
      %v411 = vrcp.pop %v410
      %v412 = vmul.f32 %v407, %v411
      %v413 = vpack.c.bf16 %v412, %v412
      %414 = vrot.lane.b32.xlu0 %v116, 48
      %v415 = vpop.permute.xlu0 %414
      %v417 = vsel %vm119, %v413, 0
      %v420 = vsel %vm184, %v415, 0
      %422 = vmatprep.subr.bf16.mxu0 0
      %423 = vmatpush1.bf16.msra.mxu0 %v420
      %424 = vmatprep.subr.bf16.mxu0 0
      %425 = vmatpush1.bf16.msra.mxu0 0
      %426 = vmatprep.subr.bf16.mxu0 0
      %427 = vmatpush1.bf16.msra.mxu0 0
      %428 = vmatprep.subr.bf16.mxu0 0
      %429 = vmatpush1.bf16.msra.mxu0 0
      %430 = vmatprep.subr.bf16.mxu0 0
      %431 = vmatpush1.bf16.msra.mxu0 0
      %432 = vmatprep.subr.bf16.mxu0 0
      %433 = vmatpush1.bf16.msra.mxu0 0
      %434 = vmatprep.subr.bf16.mxu0 0
      %435 = vmatpush1.bf16.msra.mxu0 0
      %436 = vmatprep.subr.bf16.mxu0 0
      %437 = vmatpush1.bf16.msra.mxu0 0
      %438 = vmatprep.subr.bf16.mxu0 0
      %439 = vmatpush1.bf16.msra.mxu0 0
      %440 = vmatprep.subr.bf16.mxu0 0
      %441 = vmatpush1.bf16.msra.mxu0 0
      %442 = vmatprep.subr.bf16.mxu0 0
      %443 = vmatpush1.bf16.msra.mxu0 0
      %444 = vmatprep.subr.bf16.mxu0 0
      %445 = vmatpush1.bf16.msra.mxu0 0
      %446 = vmatprep.subr.bf16.mxu0 0
      %447 = vmatpush1.bf16.msra.mxu0 0
      %448 = vmatprep.subr.bf16.mxu0 0
      %449 = vmatpush1.bf16.msra.mxu0 0
      %450 = vmatprep.subr.bf16.mxu0 0
      %451 = vmatpush1.bf16.msra.mxu0 0
      %452 = vmatprep.subr.bf16.mxu0 0
      %453 = vmatpush1.bf16.msra.mxu0 0
      %454 = vmatprep.mubr.bf16.mxu0 0
      %455 = vmatmul.mubr.bf16.gmra.mrb[0].mxu0 %v417
      %v456 = vpop.f32.mrb[0].mxu0
      %v457 = vadd.f32 0.0, %v456
      %v458 = vpop.f32.mrb[0].mxu0
      %v459 = vpop.f32.mrb[0].mxu0
      %v460 = vpop.f32.mrb[0].mxu0
      %461 = vdwg.mxu0
      %v462 = vpack.c.bf16 %v457, %v457
      %v464 = vunpack.c.l.b16 %v462
      %v465 = vpack.c.b16 %v464, %v464
      %466 = vrot.lane.b32.xlu0 %v465, 16
      %v467 = vpop.permute.xlu0 %466
      %vm469 = vcmask 191616
      %470 = vst.msk [vmem:[%s111] sm:$0xf] %vm469, %v467
      %471 = vrot.lane.b32.xlu0 %v116, 104
      %v472 = vpop.permute.xlu0 %471
      %473 = vrot.lane.b32.xlu0 %v116, 72
      %v474 = vpop.permute.xlu0 %473
      %v476 = vsel %vm119, %v472, 0
      %v479 = vsel %vm119, %v474, 0
      %481 = vmatprep.subr.bf16.mxu0 0
      %482 = vmatpush1.bf16.xpose.msra.mxu0 %v479
      %483 = vmatprep.subr.bf16.mxu0 0
      %484 = vmatpush1.bf16.xpose.msra.mxu0 0
      %485 = vmatprep.subr.bf16.mxu0 0
      %486 = vmatpush1.bf16.xpose.msra.mxu0 0
      %487 = vmatprep.subr.bf16.mxu0 0
      %488 = vmatpush1.bf16.xpose.msra.mxu0 0
      %489 = vmatprep.subr.bf16.mxu0 0
      %490 = vmatpush1.bf16.xpose.msra.mxu0 0
      %491 = vmatprep.subr.bf16.mxu0 0
      %492 = vmatpush1.bf16.xpose.msra.mxu0 0
      %493 = vmatprep.subr.bf16.mxu0 0
      %494 = vmatpush1.bf16.xpose.msra.mxu0 0
      %495 = vmatprep.subr.bf16.mxu0 0
      %496 = vmatpush1.bf16.xpose.msra.mxu0 0
      %497 = vmatprep.subr.bf16.mxu0 0
      %498 = vmatpush1.bf16.xpose.msra.mxu0 0
      %499 = vmatprep.subr.bf16.mxu0 0
      %500 = vmatpush1.bf16.xpose.msra.mxu0 0
      %501 = vmatprep.subr.bf16.mxu0 0
      %502 = vmatpush1.bf16.xpose.msra.mxu0 0
      %503 = vmatprep.subr.bf16.mxu0 0
      %504 = vmatpush1.bf16.xpose.msra.mxu0 0
      %505 = vmatprep.subr.bf16.mxu0 0
      %506 = vmatpush1.bf16.xpose.msra.mxu0 0
      %507 = vmatprep.subr.bf16.mxu0 0
      %508 = vmatpush1.bf16.xpose.msra.mxu0 0
      %509 = vmatprep.subr.bf16.mxu0 0
      %510 = vmatpush1.bf16.xpose.msra.mxu0 0
      %511 = vmatprep.subr.bf16.mxu0 0
      %512 = vmatpush1.bf16.xpose.msra.mxu0 0
      %513 = vmatprep.mubr.bf16.mxu0 0
      %514 = vmatmul.mubr.bf16.gmra.mrb[0].mxu0 %v476
      %v515 = vpop.f32.mrb[0].mxu0
      %v516 = vadd.f32 0.0, %v515
      %v517 = vpop.f32.mrb[0].mxu0
      %v518 = vpop.f32.mrb[0].mxu0
      %v519 = vpop.f32.mrb[0].mxu0
      %520 = vdwg.mxu0
      %v521 = vmul.f32 %v516, 0.35355338
      %v522 = vsel %vm119, %v521, -inf
      %523 = vmax.xlane.f32.xlu0 %v522
      %v524 = vpop.xlane.xlu0 %523
      %v525 = vsub.f32 %v521, %v524
      %v526 = vmul.f32 %v525, 1.442695
      %v527 = vpow.pop %v526
      %v528 = vsel %vm119, %v527, 0.0
      %529 = vadd.xlane.f32.xlu0 %v528
      %v530 = vpop.xlane.xlu0 %529
      %v531 = vrcp.pop %v530
      %v532 = vmul.f32 %v527, %v531
      %v533 = vpack.c.bf16 %v532, %v532
      %534 = vrot.lane.b32.xlu0 %v116, 40
      %v535 = vpop.permute.xlu0 %534
      %v537 = vsel %vm119, %v533, 0
      %v540 = vsel %vm184, %v535, 0
      %542 = vmatprep.subr.bf16.mxu0 0
      %543 = vmatpush1.bf16.msra.mxu0 %v540
      %544 = vmatprep.subr.bf16.mxu0 0
      %545 = vmatpush1.bf16.msra.mxu0 0
      %546 = vmatprep.subr.bf16.mxu0 0
      %547 = vmatpush1.bf16.msra.mxu0 0
      %548 = vmatprep.subr.bf16.mxu0 0
      %549 = vmatpush1.bf16.msra.mxu0 0
      %550 = vmatprep.subr.bf16.mxu0 0
      %551 = vmatpush1.bf16.msra.mxu0 0
      %552 = vmatprep.subr.bf16.mxu0 0
      %553 = vmatpush1.bf16.msra.mxu0 0
      %554 = vmatprep.subr.bf16.mxu0 0
      %555 = vmatpush1.bf16.msra.mxu0 0
      %556 = vmatprep.subr.bf16.mxu0 0
      %557 = vmatpush1.bf16.msra.mxu0 0
      %558 = vmatprep.subr.bf16.mxu0 0
      %559 = vmatpush1.bf16.msra.mxu0 0
      %560 = vmatprep.subr.bf16.mxu0 0
      %561 = vmatpush1.bf16.msra.mxu0 0
      %562 = vmatprep.subr.bf16.mxu0 0
      %563 = vmatpush1.bf16.msra.mxu0 0
      %564 = vmatprep.subr.bf16.mxu0 0
      %565 = vmatpush1.bf16.msra.mxu0 0
      %566 = vmatprep.subr.bf16.mxu0 0
      %567 = vmatpush1.bf16.msra.mxu0 0
      %568 = vmatprep.subr.bf16.mxu0 0
      %569 = vmatpush1.bf16.msra.mxu0 0
      %570 = vmatprep.subr.bf16.mxu0 0
      %571 = vmatpush1.bf16.msra.mxu0 0
      %572 = vmatprep.subr.bf16.mxu0 0
      %573 = vmatpush1.bf16.msra.mxu0 0
      %574 = vmatprep.mubr.bf16.mxu0 0
      %575 = vmatmul.mubr.bf16.gmra.mrb[0].mxu0 %v537
      %v576 = vpop.f32.mrb[0].mxu0
      %v577 = vadd.f32 0.0, %v576
      %v578 = vpop.f32.mrb[0].mxu0
      %v579 = vpop.f32.mrb[0].mxu0
      %v580 = vpop.f32.mrb[0].mxu0
      %581 = vdwg.mxu0
      %v582 = vpack.c.bf16 %v577, %v577
      %v584 = vunpack.c.l.b16 %v582
      %v585 = vpack.c.b16 %v584, %v584
      %586 = vrot.lane.b32.xlu0 %v585, 24
      %v587 = vpop.permute.xlu0 %586
      %vm589 = vcmask 257216
      %590 = vst.msk [vmem:[%s111] sm:$0xf] %vm589, %v587
      %p591 = scmp.lt.s32.totalorder %s12, 1
      %s592 = scalar_select %p591, %s12, 1
      %s593 = smul.addr %s592, 4
      %s594 = scalar_lea.vmem %s1, %s593
      // Predicated region
      $region25: #{transformer_forward.11} parent=23 // pred_check
        %p595 = pneg %p56
      $region26: #{transformer_forward.11} parent=23 // pred_check_branch
        %597 = sbr.rel (%p595) target = $region28
      $region27: #{transformer_forward.11} parent=23 // pred_region
        _
      $region28: #{transformer_forward.11} parent=23 // pred_fallthru
        _
    $region24: #{transformer_forward.11} parent=5 // pred_fallthru
      _
    %p598 = scmp.le.s32.totalorder 2, %s7
    // Predicated region
    $region29: #{transformer_forward.11} parent=5 // pred_check
      %p599 = pneg %p598
    $region30: #{transformer_forward.11} parent=5 // pred_check_branch
      %601 = sbr.rel (%p599) target = $region32
    $region31: #{transformer_forward.11} parent=5 // pred_region
      %s602 = ssub.s32 %s7, 2
      // Predicated region
      $region33: #{transformer_forward.11} parent=31 // pred_check
        %p603 = pneg %p62
      $region34: #{transformer_forward.11} parent=31 // pred_check_branch
        %605 = sbr.rel (%p603) target = $region36
      $region35: #{transformer_forward.11} parent=31 // pred_region
        %p606 = scmp.lt.s32.totalorder %s13, 1
        %s607 = scalar_select %p606, %s13, 1
        %s608 = smul.addr %s607, 4
        %s609 = scalar_lea.vmem %s1, %s608
      $region36: #{transformer_forward.11} parent=31 // pred_fallthru
        _
    $region32: #{transformer_forward.11} parent=5 // pred_fallthru
      _
  $region6: #{transformer_forward.11} parent=0 // loop_footer
    %s11 = sadd.s32 1, %s7
  $region7: #{transformer_forward.11} parent=0 // loop_footer_branch
    %6 = sbr.rel target = $region3
  $region8: #{transformer_forward.11} parent=0 // loop_exit
    _

// kernel: transformer_forward.13
$region0: #{transformer_forward.13}
  #allocation0 [shape = 'u32[]', space=smem, size = 0x4, offset = 0x4, fixed_abs, tag = 'smem constant byte address 0x4 - core index']
  #allocation1 [shape = 'u32[144,128]{1,0:T(1,128)}', space=vmem, size = 0x12000, scoped, tag = 'internal scratch']
  #allocation2 [shape = 'bf16[16,32]{1,0:T(16,128)(2,1)}', space=vmem, size = 0x1000, scoped, tag = 'scratch operand']
  %s0 = inlined_call_operand.vmem [shape: f32[16,32], index: 0, kind: input, shape index: {}]
  %s1 = inlined_call_operand.vmem [shape: f32[1,32], index: 1, kind: input, shape index: {}]
  %s2 = inlined_call_operand.vmem [shape: f32[1,32], index: 2, kind: input, shape index: {}]
  %s3 = inlined_call_operand.vmem [shape: bf16[32,128], index: 3, kind: input, shape index: {}]
  %s4 = inlined_call_operand.vmem [shape: f32[1,128], index: 4, kind: input, shape index: {}]
  %s5 = inlined_call_operand.vmem [shape: bf16[16,128], index: 5, kind: output, shape index: {}]
  %s6 = sld [smem:[#allocation0]]
  $region34: #{transformer_forward.13} parent=0
    _
  %s8 = ssub.s32 1, %s6
  %s9 = scalar_select 0, %s8, %s6
  // Predicated region
  $region2: #{transformer_forward.13} parent=0 // pred_check
    _
  $region3: #{transformer_forward.13} parent=0 // pred_check_branch
    %11 = sbr.rel (0) target = $region5
  $region4: #{transformer_forward.13} parent=0 // pred_region
    _
  $region5: #{transformer_forward.13} parent=0 // pred_fallthru
    _
  // Predicated region
  $region6: #{transformer_forward.13} parent=0 // pred_check
    _
  $region7: #{transformer_forward.13} parent=0 // pred_check_branch
    %13 = sbr.rel (0) target = $region9
  $region8: #{transformer_forward.13} parent=0 // pred_region
    _
  $region9: #{transformer_forward.13} parent=0 // pred_fallthru
    _
  // Predicated region
  $region10: #{transformer_forward.13} parent=0 // pred_check
    _
  $region11: #{transformer_forward.13} parent=0 // pred_check_branch
    %15 = sbr.rel (0) target = $region13
  $region12: #{transformer_forward.13} parent=0 // pred_region
    _
  $region13: #{transformer_forward.13} parent=0 // pred_fallthru
    _
  // Predicated region
  $region14: #{transformer_forward.13} parent=0 // pred_check
    _
  $region15: #{transformer_forward.13} parent=0 // pred_check_branch
    %17 = sbr.rel (0) target = $region17
  $region16: #{transformer_forward.13} parent=0 // pred_region
    _
  $region17: #{transformer_forward.13} parent=0 // pred_fallthru
    _
  // Predicated region
  $region18: #{transformer_forward.13} parent=0 // pred_check
    _
  $region19: #{transformer_forward.13} parent=0 // pred_check_branch
    %19 = sbr.rel (0) target = $region21
  $region20: #{transformer_forward.13} parent=0 // pred_region
    _
  $region21: #{transformer_forward.13} parent=0 // pred_fallthru
    _
  %p21 = scmp.eq.s32.totalorder 0, 0
  // Predicated region
  $region22: #{transformer_forward.13} parent=0 // pred_check
    %p22 = pneg %p21
  $region23: #{transformer_forward.13} parent=0 // pred_check_branch
    %24 = sbr.rel (%p22) target = $region25
  $region24: #{transformer_forward.13} parent=0 // pred_region
    %v25 = vld [vmem:[%s0] sm:$0xff]
    %v26 = vld [vmem:[%s0 + $0x8] sm:$0xff]
    %vm27 = vcmask 261120
    %v28 = vsel %vm27, %v25, 0.0
    %29 = vadd.xlane.f32.xlu0 %v28
    %v30 = vpop.xlane.xlu0 %29
    %v31 = vsel %vm27, %v26, 0.0
    %32 = vadd.xlane.f32.xlu0 %v31
    %v33 = vpop.xlane.xlu0 %32
    %v34 = vrcp.pop 32.0
    %v35 = vmul.f32 %v30, %v34
    %v36 = vmul.f32 %v33, %v34
    %v37 = vsub.f32 %v25, %v35
    %v38 = vsub.f32 %v26, %v36
    %v39 = vmul.f32 %v37, %v37
    %v40 = vmul.f32 %v38, %v38
    %v41 = vsel %vm27, %v39, 0.0
    %42 = vadd.xlane.f32.xlu0 %v41
    %v43 = vpop.xlane.xlu0 %42
    %v44 = vsel %vm27, %v40, 0.0
    %45 = vadd.xlane.f32.xlu0 %v44
    %v46 = vpop.xlane.xlu0 %45
    %v47 = vmul.f32 %v43, %v34
    %v48 = vmul.f32 %v46, %v34
    %v49 = vadd.f32 %v47, 1e-05
    %v50 = vadd.f32 %v48, 1e-05
    %v51 = vrsqrt.pop %v49
    %v52 = vrsqrt.pop %v50
    %v53 = vmul.f32 %v37, %v51
    %v54 = vmul.f32 %v38, %v52
    %v55 = vld [vmem:[%s1] sm:$0x1]
    %v57 = vlaneseq
    %v58 = vshrl.u32 %v57, 7
    %v59 = vsub.s32 0, %v58
    %v60 = vrot.slane %v55, %v59
    %v62 = vmul.f32 %v53, %v60
    %v63 = vmul.f32 %v54, %v60
    %v64 = vld [vmem:[%s2] sm:$0x1]
    %v66 = vlaneseq
    %v67 = vshrl.u32 %v66, 7
    %v68 = vsub.s32 0, %v67
    %v69 = vrot.slane %v64, %v68
    %v71 = vadd.f32 %v62, %v69
    %v72 = vadd.f32 %v63, %v69
    %v73 = vpack.c.bf16 %v72, %v71
    %74 = vst.msk [vmem:[#allocation2] sm:$0xff] %vm27, %v73
  $region25: #{transformer_forward.13} parent=0 // pred_fallthru
    _
  %v75 = vld [vmem:[#allocation2] sm:$0xff]
  %v76 = vld [vmem:[%s3] sm:$0xf]
  %v77 = vld [vmem:[%s3 + $0x4] sm:$0xf]
  %v78 = vld [vmem:[%s3 + $0x8] sm:$0xf]
  %v79 = vld [vmem:[%s3 + $0xc] sm:$0xf]
  %v80 = vld [vmem:[%s4] sm:$0x1]
  %v82 = vlaneseq
  %v83 = vshrl.u32 %v82, 7
  %v84 = vsub.s32 0, %v83
  %v85 = vrot.slane %v80, %v84
  %v91 = vunpack.c.l.b16 %v76
  %v92 = vunpack.c.l.b16 %v77
  %v93 = vunpack.c.l.b16 %v78
  %v94 = vunpack.c.l.b16 %v79
  %v95 = vpack.c.b16 %v92, %v91
  %v96 = vpack.c.b16 %v94, %v93
  %vm99 = vcmask 261120
  %v101 = vsel %vm99, %v75, 0
  %103 = vmatprep.subr.bf16.mxu0 0
  %104 = vmatpush1.bf16.msra.mxu0 %v95
  %105 = vmatprep.subr.bf16.mxu0 0
  %106 = vmatpush1.bf16.msra.mxu0 %v96
  %107 = vmatprep.subr.bf16.mxu0 0
  %108 = vmatpush1.bf16.msra.mxu0 0
  %109 = vmatprep.subr.bf16.mxu0 0
  %110 = vmatpush1.bf16.msra.mxu0 0
  %111 = vmatprep.subr.bf16.mxu0 0
  %112 = vmatpush1.bf16.msra.mxu0 0
  %113 = vmatprep.subr.bf16.mxu0 0
  %114 = vmatpush1.bf16.msra.mxu0 0
  %115 = vmatprep.subr.bf16.mxu0 0
  %116 = vmatpush1.bf16.msra.mxu0 0
  %117 = vmatprep.subr.bf16.mxu0 0
  %118 = vmatpush1.bf16.msra.mxu0 0
  %119 = vmatprep.subr.bf16.mxu0 0
  %120 = vmatpush1.bf16.msra.mxu0 0
  %121 = vmatprep.subr.bf16.mxu0 0
  %122 = vmatpush1.bf16.msra.mxu0 0
  %123 = vmatprep.subr.bf16.mxu0 0
  %124 = vmatpush1.bf16.msra.mxu0 0
  %125 = vmatprep.subr.bf16.mxu0 0
  %126 = vmatpush1.bf16.msra.mxu0 0
  %127 = vmatprep.subr.bf16.mxu0 0
  %128 = vmatpush1.bf16.msra.mxu0 0
  %129 = vmatprep.subr.bf16.mxu0 0
  %130 = vmatpush1.bf16.msra.mxu0 0
  %131 = vmatprep.subr.bf16.mxu0 0
  %132 = vmatpush1.bf16.msra.mxu0 0
  %133 = vmatprep.subr.bf16.mxu0 0
  %134 = vmatpush1.bf16.msra.mxu0 0
  %135 = vmatprep.mubr.bf16.mxu0 0
  %136 = vmatmul.mubr.bf16.gmra.mrb[0].mxu0 %v101
  %v137 = vpop.f32.mrb[0].mxu0
  %v138 = vadd.f32 %v85, %v137
  %v139 = vpop.f32.mrb[0].mxu0
  %v140 = vpop.f32.mrb[0].mxu0
  %v141 = vadd.f32 %v85, %v140
  %v142 = vpop.f32.mrb[0].mxu0
  %143 = vdwg.mxu0
  %v144 = vmul.f32 %v138, 1.702
  %v145 = vmul.f32 %v141, 1.702
  %v146 = vxor.u32 %v144, 2147483648
  %v147 = vxor.u32 %v145, 2147483648
  %v148 = vmul.f32 %v146, 1.442695
  %v149 = vpow.pop %v148
  %v150 = vmul.f32 %v147, 1.442695
  %v151 = vpow.pop %v150
  %v152 = vadd.f32 %v149, 1.0
  %v153 = vadd.f32 %v151, 1.0
  %v154 = vrcp.pop %v152
  %v155 = vmul.f32 1.0, %v154
  %v156 = vrcp.pop %v153
  %v157 = vmul.f32 1.0, %v156
  %v158 = vmul.f32 %v138, %v155
  %v159 = vmul.f32 %v141, %v157
  %v160 = vpack.c.bf16 %v159, %v158
  %v162 = vunpack.c.l.b16 %v160
  %v163 = vunpack.c.h.b16 %v160
  %v164 = vpack.c.b16 %v162, %v162
  %v165 = vpack.c.b16 %v163, %v163
  %168 = vst [vmem:[%s5] sm:$0xf] %v164
  %169 = vst [vmem:[%s5 + $0x4] sm:$0xf] %v165
  // Predicated region
  $region26: #{transformer_forward.13} parent=0 // pred_check
    _
  $region27: #{transformer_forward.13} parent=0 // pred_check_branch
    %171 = sbr.rel (0) target = $region29
  $region28: #{transformer_forward.13} parent=0 // pred_region
    _
  $region29: #{transformer_forward.13} parent=0 // pred_fallthru
    _
  // Predicated region
  $region30: #{transformer_forward.13} parent=0 // pred_check
    _
  $region31: #{transformer_forward.13} parent=0 // pred_check_branch
    %173 = sbr.rel (0) target = $region33
  $region32: #{transformer_forward.13} parent=0 // pred_region
    _
  $region33: #{transformer_forward.13} parent=0 // pred_fallthru
    _

// kernel: transformer_forward.19
$region0: #{transformer_forward.19}
  #allocation0 [shape = 'u32[]', space=smem, size = 0x4, offset = 0x4, fixed_abs, tag = 'smem constant byte address 0x4 - core index']
  #allocation1 [shape = 'u32[144,128]{1,0:T(1,128)}', space=vmem, size = 0x12000, scoped, tag = 'internal scratch']
  #allocation2 [shape = 'f32[16,32]{1,0:T(8,128)}', space=vmem, size = 0x2000, scoped, tag = 'scratch operand']
  %s0 = inlined_call_operand.vmem [shape: bf16[16,128], index: 0, kind: input, shape index: {}]
  %s1 = inlined_call_operand.vmem [shape: bf16[128,32], index: 1, kind: input, shape index: {}]
  %s2 = inlined_call_operand.vmem [shape: f32[1,32], index: 2, kind: input, shape index: {}]
  %s3 = inlined_call_operand.vmem [shape: f32[16,32], index: 3, kind: input, shape index: {}]
  %s4 = inlined_call_operand.hbm [shape: f32[16,32], index: 4, kind: output, shape index: {}]
  %s5 = sld [smem:[#allocation0]]
  $region34: #{transformer_forward.19} parent=0
    _
  %s7 = ssub.s32 1, %s5
  %s8 = scalar_select 0, %s7, %s5
  $region1: #{transformer_forward.19} parent=0
    #allocation3 [shape = 'u8[8192]{0}', space=vmem, size = 0x2000, scoped, tag = 'output window, operand 0, single buffered']
    #allocation4 [shape = 's32[1]{0}', space=sflag, size = 0x4, scoped, tag = 'scoped memory for transformer_forward.19']
    %9 = vsyncpa [#allocation4], 0
    // Predicated region
    $region2: #{transformer_forward.19} parent=1 // pred_check
      _
    $region3: #{transformer_forward.19} parent=1 // pred_check_branch
      %11 = sbr.rel (0) target = $region5
    $region4: #{transformer_forward.19} parent=1 // pred_region
      _
    $region5: #{transformer_forward.19} parent=1 // pred_fallthru
      _
    // Predicated region
    $region6: #{transformer_forward.19} parent=1 // pred_check
      _
    $region7: #{transformer_forward.19} parent=1 // pred_check_branch
      %13 = sbr.rel (0) target = $region9
    $region8: #{transformer_forward.19} parent=1 // pred_region
      _
    $region9: #{transformer_forward.19} parent=1 // pred_fallthru
      _
    // Predicated region
    $region10: #{transformer_forward.19} parent=1 // pred_check
      _
    $region11: #{transformer_forward.19} parent=1 // pred_check_branch
      %15 = sbr.rel (0) target = $region13
    $region12: #{transformer_forward.19} parent=1 // pred_region
      _
    $region13: #{transformer_forward.19} parent=1 // pred_fallthru
      _
    // Predicated region
    $region14: #{transformer_forward.19} parent=1 // pred_check
      _
    $region15: #{transformer_forward.19} parent=1 // pred_check_branch
      %17 = sbr.rel (0) target = $region17
    $region16: #{transformer_forward.19} parent=1 // pred_region
      _
    $region17: #{transformer_forward.19} parent=1 // pred_fallthru
      _
    %p19 = scmp.eq.s32.totalorder 0, 0
    // Predicated region
    $region18: #{transformer_forward.19} parent=1 // pred_check
      %p20 = pneg %p19
    $region19: #{transformer_forward.19} parent=1 // pred_check_branch
      %22 = sbr.rel (%p20) target = $region21
    $region20: #{transformer_forward.19} parent=1 // pred_region
      %vm23 = vcmask 261120
      %24 = vst.msk [vmem:[#allocation2] sm:$0xff] %vm23, 0.0
      %25 = vst.msk [vmem:[#allocation2 + $0x8] sm:$0xff] %vm23, 0.0
    $region21: #{transformer_forward.19} parent=1 // pred_fallthru
      _
    %v26 = vld [vmem:[#allocation2] sm:$0xff]
    %v27 = vld [vmem:[#allocation2 + $0x8] sm:$0xff]
    %v28 = vld [vmem:[%s0] sm:$0xf]
    %v29 = vld [vmem:[%s0 + $0x4] sm:$0xf]
    %v30 = vld [vmem:[%s1] sm:$0xf]
    %v31 = vld [vmem:[%s1 + $0x4] sm:$0xf]
    %v32 = vld [vmem:[%s1 + $0x8] sm:$0xf]
    %v33 = vld [vmem:[%s1 + $0xc] sm:$0xf]
    %v34 = vld [vmem:[%s1 + $0x10] sm:$0xf]
    %v35 = vld [vmem:[%s1 + $0x14] sm:$0xf]
    %v36 = vld [vmem:[%s1 + $0x18] sm:$0xf]
    %v37 = vld [vmem:[%s1 + $0x1c] sm:$0xf]
    %v38 = vld [vmem:[%s1 + $0x20] sm:$0xf]
    %v39 = vld [vmem:[%s1 + $0x24] sm:$0xf]
    %v40 = vld [vmem:[%s1 + $0x28] sm:$0xf]
    %v41 = vld [vmem:[%s1 + $0x2c] sm:$0xf]
    %v42 = vld [vmem:[%s1 + $0x30] sm:$0xf]
    %v43 = vld [vmem:[%s1 + $0x34] sm:$0xf]
    %v44 = vld [vmem:[%s1 + $0x38] sm:$0xf]
    %v45 = vld [vmem:[%s1 + $0x3c] sm:$0xf]
    %v48 = vunpack.c.l.b16 %v28
    %v49 = vunpack.c.l.b16 %v29
    %v50 = vpack.c.b16 %v49, %v48
    %v68 = vunpack.c.l.b16 %v30
    %v69 = vunpack.c.l.b16 %v31
    %v70 = vunpack.c.l.b16 %v32
    %v71 = vunpack.c.l.b16 %v33
    %v72 = vunpack.c.l.b16 %v34
    %v73 = vunpack.c.l.b16 %v35
    %v74 = vunpack.c.l.b16 %v36
    %v75 = vunpack.c.l.b16 %v37
    %v76 = vunpack.c.l.b16 %v38
    %v77 = vunpack.c.l.b16 %v39
    %v78 = vunpack.c.l.b16 %v40
    %v79 = vunpack.c.l.b16 %v41
    %v80 = vunpack.c.l.b16 %v42
    %v81 = vunpack.c.l.b16 %v43
    %v82 = vunpack.c.l.b16 %v44
    %v83 = vunpack.c.l.b16 %v45
    %v84 = vpack.c.b16 %v69, %v68
    %v85 = vpack.c.b16 %v71, %v70
    %v86 = vpack.c.b16 %v73, %v72
    %v87 = vpack.c.b16 %v75, %v74
    %v88 = vpack.c.b16 %v77, %v76
    %v89 = vpack.c.b16 %v79, %v78
    %v90 = vpack.c.b16 %v81, %v80
    %v91 = vpack.c.b16 %v83, %v82
    %100 = vmatprep.subr.bf16.mxu0 0
    %101 = vmatpush1.bf16.msra.mxu0 %v84
    %102 = vmatprep.subr.bf16.mxu0 0
    %103 = vmatpush1.bf16.msra.mxu0 %v85
    %104 = vmatprep.subr.bf16.mxu0 0
    %105 = vmatpush1.bf16.msra.mxu0 %v86
    %106 = vmatprep.subr.bf16.mxu0 0
    %107 = vmatpush1.bf16.msra.mxu0 %v87
    %108 = vmatprep.subr.bf16.mxu0 0
    %109 = vmatpush1.bf16.msra.mxu0 %v88
    %110 = vmatprep.subr.bf16.mxu0 0
    %111 = vmatpush1.bf16.msra.mxu0 %v89
    %112 = vmatprep.subr.bf16.mxu0 0
    %113 = vmatpush1.bf16.msra.mxu0 %v90
    %114 = vmatprep.subr.bf16.mxu0 0
    %115 = vmatpush1.bf16.msra.mxu0 %v91
    %116 = vmatprep.subr.bf16.mxu0 0
    %117 = vmatpush1.bf16.msra.mxu0 0
    %118 = vmatprep.subr.bf16.mxu0 0
    %119 = vmatpush1.bf16.msra.mxu0 0
    %120 = vmatprep.subr.bf16.mxu0 0
    %121 = vmatpush1.bf16.msra.mxu0 0
    %122 = vmatprep.subr.bf16.mxu0 0
    %123 = vmatpush1.bf16.msra.mxu0 0
    %124 = vmatprep.subr.bf16.mxu0 0
    %125 = vmatpush1.bf16.msra.mxu0 0
    %126 = vmatprep.subr.bf16.mxu0 0
    %127 = vmatpush1.bf16.msra.mxu0 0
    %128 = vmatprep.subr.bf16.mxu0 0
    %129 = vmatpush1.bf16.msra.mxu0 0
    %130 = vmatprep.subr.bf16.mxu0 0
    %131 = vmatpush1.bf16.msra.mxu0 0
    %132 = vmatprep.mubr.bf16.mxu0 0
    %133 = vmatmul.mubr.bf16.gmra.mrb[0].mxu0 %v50
    %v134 = vpop.f32.mrb[0].mxu0
    %v135 = vadd.f32 0.0, %v134
    %v136 = vpop.f32.mrb[0].mxu0
    %v137 = vpop.f32.mrb[0].mxu0
    %v138 = vadd.f32 0.0, %v137
    %v139 = vpop.f32.mrb[0].mxu0
    %140 = vdwg.mxu0
    %v141 = vadd.f32 %v26, %v135
    %v142 = vadd.f32 %v27, %v138
    %vm143 = vcmask 261120
    %144 = vst.msk [vmem:[#allocation2] sm:$0xff] %vm143, %v141
    %145 = vst.msk [vmem:[#allocation2 + $0x8] sm:$0xff] %vm143, %v142
    // Predicated region
    $region22: #{transformer_forward.19} parent=1 // pred_check
      %p146 = pneg %p19
    $region23: #{transformer_forward.19} parent=1 // pred_check_branch
      %148 = sbr.rel (%p146) target = $region25
    $region24: #{transformer_forward.19} parent=1 // pred_region
      %v149 = vld [vmem:[#allocation2] sm:$0xff]
      %v150 = vld [vmem:[#allocation2 + $0x8] sm:$0xff]
      %v151 = vld [vmem:[%s2] sm:$0x1]
      %v153 = vlaneseq
      %v154 = vshrl.u32 %v153, 7
      %v155 = vsub.s32 0, %v154
      %v156 = vrot.slane %v151, %v155
      %v158 = vadd.f32 %v149, %v156
      %v159 = vadd.f32 %v150, %v156
      %v160 = vld [vmem:[%s3] sm:$0xff]
      %v161 = vld [vmem:[%s3 + $0x8] sm:$0xff]
      %v162 = vadd.f32 %v158, %v160
      %v163 = vadd.f32 %v159, %v161
      %164 = vst.msk [vmem:[#allocation3] sm:$0xff] %vm143, %v162
      %165 = vst.msk [vmem:[#allocation3 + $0x8] sm:$0xff] %vm143, %v163
    $region25: #{transformer_forward.19} parent=1 // pred_fallthru
      _
    // Predicated region
    $region26: #{transformer_forward.19} parent=1 // pred_check
      _
    $region27: #{transformer_forward.19} parent=1 // pred_check_branch
      %167 = sbr.rel (0) target = $region29
    $region28: #{transformer_forward.19} parent=1 // pred_region
      %s169 = ssub.s32 256, 256
      %170 = vsyncadd [#allocation4], %s169
      %s171 = sshll.u32 [#allocation3], 4
      %s172 = int_to_ptr.vmem [resolvable:$true] %s171
      %177 = dma.vmem_to_hbm [thread:$0]  %s172, 256, %s4, [#allocation4], 128, 128, 8
    $region29: #{transformer_forward.19} parent=1 // pred_fallthru
      _
    // Predicated region
    $region30: #{transformer_forward.19} parent=1 // pred_check
      _
    $region31: #{transformer_forward.19} parent=1 // pred_check_branch
      %179 = sbr.rel (0) target = $region33
    $region32: #{transformer_forward.19} parent=1 // pred_region
      %180 = dma.done [#allocation4], 256
    $region33: #{transformer_forward.19} parent=1 // pred_fallthru
      _
    %181 = vsyncpa [#allocation4], 1

// kernel: transformer_forward.14
$region0: #{transformer_forward.14}
  #allocation0 [shape = 'u32[]', space=smem, size = 0x4, offset = 0x4, fixed_abs, tag = 'smem constant byte address 0x4 - core index']
  #allocation1 [shape = 'u32[144,128]{1,0:T(1,128)}', space=vmem, size = 0x12000, scoped, tag = 'internal scratch']
  #allocation2 [shape = 'f32[16,32]{1,0:T(8,128)}', space=vmem, size = 0x2000, scoped, tag = 'scratch operand']
  %s0 = inlined_call_operand.vmem [shape: bf16[16,128], index: 0, kind: input, shape index: {}]
  %s1 = inlined_call_operand.vmem [shape: bf16[128,32], index: 1, kind: input, shape index: {}]
  %s2 = inlined_call_operand.vmem [shape: f32[1,32], index: 2, kind: input, shape index: {}]
  %s3 = inlined_call_operand.vmem [shape: f32[16,32], index: 3, kind: input, shape index: {}]
  %s4 = inlined_call_operand.vmem [shape: f32[16,32], index: 4, kind: output, shape index: {}]
  %s5 = sld [smem:[#allocation0]]
  $region34: #{transformer_forward.14} parent=0
    _
  %s7 = ssub.s32 1, %s5
  %s8 = scalar_select 0, %s7, %s5
  // Predicated region
  $region2: #{transformer_forward.14} parent=0 // pred_check
    _
  $region3: #{transformer_forward.14} parent=0 // pred_check_branch
    %10 = sbr.rel (0) target = $region5
  $region4: #{transformer_forward.14} parent=0 // pred_region
    _
  $region5: #{transformer_forward.14} parent=0 // pred_fallthru
    _
  // Predicated region
  $region6: #{transformer_forward.14} parent=0 // pred_check
    _
  $region7: #{transformer_forward.14} parent=0 // pred_check_branch
    %12 = sbr.rel (0) target = $region9
  $region8: #{transformer_forward.14} parent=0 // pred_region
    _
  $region9: #{transformer_forward.14} parent=0 // pred_fallthru
    _
  // Predicated region
  $region10: #{transformer_forward.14} parent=0 // pred_check
    _
  $region11: #{transformer_forward.14} parent=0 // pred_check_branch
    %14 = sbr.rel (0) target = $region13
  $region12: #{transformer_forward.14} parent=0 // pred_region
    _
  $region13: #{transformer_forward.14} parent=0 // pred_fallthru
    _
  // Predicated region
  $region14: #{transformer_forward.14} parent=0 // pred_check
    _
  $region15: #{transformer_forward.14} parent=0 // pred_check_branch
    %16 = sbr.rel (0) target = $region17
  $region16: #{transformer_forward.14} parent=0 // pred_region
    _
  $region17: #{transformer_forward.14} parent=0 // pred_fallthru
    _
  %p18 = scmp.eq.s32.totalorder 0, 0
  // Predicated region
  $region18: #{transformer_forward.14} parent=0 // pred_check
    %p19 = pneg %p18
  $region19: #{transformer_forward.14} parent=0 // pred_check_branch
    %21 = sbr.rel (%p19) target = $region21
  $region20: #{transformer_forward.14} parent=0 // pred_region
    %vm22 = vcmask 261120
    %23 = vst.msk [vmem:[#allocation2] sm:$0xff] %vm22, 0.0
    %24 = vst.msk [vmem:[#allocation2 + $0x8] sm:$0xff] %vm22, 0.0
  $region21: #{transformer_forward.14} parent=0 // pred_fallthru
    _
  %v25 = vld [vmem:[#allocation2] sm:$0xff]
  %v26 = vld [vmem:[#allocation2 + $0x8] sm:$0xff]
  %v27 = vld [vmem:[%s0] sm:$0xf]
  %v28 = vld [vmem:[%s0 + $0x4] sm:$0xf]
  %v29 = vld [vmem:[%s1] sm:$0xf]
  %v30 = vld [vmem:[%s1 + $0x4] sm:$0xf]
  %v31 = vld [vmem:[%s1 + $0x8] sm:$0xf]
  %v32 = vld [vmem:[%s1 + $0xc] sm:$0xf]
  %v33 = vld [vmem:[%s1 + $0x10] sm:$0xf]
  %v34 = vld [vmem:[%s1 + $0x14] sm:$0xf]
  %v35 = vld [vmem:[%s1 + $0x18] sm:$0xf]
  %v36 = vld [vmem:[%s1 + $0x1c] sm:$0xf]
  %v37 = vld [vmem:[%s1 + $0x20] sm:$0xf]
  %v38 = vld [vmem:[%s1 + $0x24] sm:$0xf]
  %v39 = vld [vmem:[%s1 + $0x28] sm:$0xf]
  %v40 = vld [vmem:[%s1 + $0x2c] sm:$0xf]
  %v41 = vld [vmem:[%s1 + $0x30] sm:$0xf]
  %v42 = vld [vmem:[%s1 + $0x34] sm:$0xf]
  %v43 = vld [vmem:[%s1 + $0x38] sm:$0xf]
  %v44 = vld [vmem:[%s1 + $0x3c] sm:$0xf]
  %v47 = vunpack.c.l.b16 %v27
  %v48 = vunpack.c.l.b16 %v28
  %v49 = vpack.c.b16 %v48, %v47
  %v67 = vunpack.c.l.b16 %v29
  %v68 = vunpack.c.l.b16 %v30
  %v69 = vunpack.c.l.b16 %v31
  %v70 = vunpack.c.l.b16 %v32
  %v71 = vunpack.c.l.b16 %v33
  %v72 = vunpack.c.l.b16 %v34
  %v73 = vunpack.c.l.b16 %v35
  %v74 = vunpack.c.l.b16 %v36
  %v75 = vunpack.c.l.b16 %v37
  %v76 = vunpack.c.l.b16 %v38
  %v77 = vunpack.c.l.b16 %v39
  %v78 = vunpack.c.l.b16 %v40
  %v79 = vunpack.c.l.b16 %v41
  %v80 = vunpack.c.l.b16 %v42
  %v81 = vunpack.c.l.b16 %v43
  %v82 = vunpack.c.l.b16 %v44
  %v83 = vpack.c.b16 %v68, %v67
  %v84 = vpack.c.b16 %v70, %v69
  %v85 = vpack.c.b16 %v72, %v71
  %v86 = vpack.c.b16 %v74, %v73
  %v87 = vpack.c.b16 %v76, %v75
  %v88 = vpack.c.b16 %v78, %v77
  %v89 = vpack.c.b16 %v80, %v79
  %v90 = vpack.c.b16 %v82, %v81
  %99 = vmatprep.subr.bf16.mxu0 0
  %100 = vmatpush1.bf16.msra.mxu0 %v83
  %101 = vmatprep.subr.bf16.mxu0 0
  %102 = vmatpush1.bf16.msra.mxu0 %v84
  %103 = vmatprep.subr.bf16.mxu0 0
  %104 = vmatpush1.bf16.msra.mxu0 %v85
  %105 = vmatprep.subr.bf16.mxu0 0
  %106 = vmatpush1.bf16.msra.mxu0 %v86
  %107 = vmatprep.subr.bf16.mxu0 0
  %108 = vmatpush1.bf16.msra.mxu0 %v87
  %109 = vmatprep.subr.bf16.mxu0 0
  %110 = vmatpush1.bf16.msra.mxu0 %v88
  %111 = vmatprep.subr.bf16.mxu0 0
  %112 = vmatpush1.bf16.msra.mxu0 %v89
  %113 = vmatprep.subr.bf16.mxu0 0
  %114 = vmatpush1.bf16.msra.mxu0 %v90
  %115 = vmatprep.subr.bf16.mxu0 0
  %116 = vmatpush1.bf16.msra.mxu0 0
  %117 = vmatprep.subr.bf16.mxu0 0
  %118 = vmatpush1.bf16.msra.mxu0 0
  %119 = vmatprep.subr.bf16.mxu0 0
  %120 = vmatpush1.bf16.msra.mxu0 0
  %121 = vmatprep.subr.bf16.mxu0 0
  %122 = vmatpush1.bf16.msra.mxu0 0
  %123 = vmatprep.subr.bf16.mxu0 0
  %124 = vmatpush1.bf16.msra.mxu0 0
  %125 = vmatprep.subr.bf16.mxu0 0
  %126 = vmatpush1.bf16.msra.mxu0 0
  %127 = vmatprep.subr.bf16.mxu0 0
  %128 = vmatpush1.bf16.msra.mxu0 0
  %129 = vmatprep.subr.bf16.mxu0 0
  %130 = vmatpush1.bf16.msra.mxu0 0
  %131 = vmatprep.mubr.bf16.mxu0 0
  %132 = vmatmul.mubr.bf16.gmra.mrb[0].mxu0 %v49
  %v133 = vpop.f32.mrb[0].mxu0
  %v134 = vadd.f32 0.0, %v133
  %v135 = vpop.f32.mrb[0].mxu0
  %v136 = vpop.f32.mrb[0].mxu0
  %v137 = vadd.f32 0.0, %v136
  %v138 = vpop.f32.mrb[0].mxu0
  %139 = vdwg.mxu0
  %v140 = vadd.f32 %v25, %v134
  %v141 = vadd.f32 %v26, %v137
  %vm142 = vcmask 261120
  %143 = vst.msk [vmem:[#allocation2] sm:$0xff] %vm142, %v140
  %144 = vst.msk [vmem:[#allocation2 + $0x8] sm:$0xff] %vm142, %v141
  // Predicated region
  $region22: #{transformer_forward.14} parent=0 // pred_check
    %p145 = pneg %p18
  $region23: #{transformer_forward.14} parent=0 // pred_check_branch
    %147 = sbr.rel (%p145) target = $region25
  $region24: #{transformer_forward.14} parent=0 // pred_region
    %v148 = vld [vmem:[#allocation2] sm:$0xff]
    %v149 = vld [vmem:[#allocation2 + $0x8] sm:$0xff]
    %v150 = vld [vmem:[%s2] sm:$0x1]
    %v152 = vlaneseq
    %v153 = vshrl.u32 %v152, 7
    %v154 = vsub.s32 0, %v153
    %v155 = vrot.slane %v150, %v154
    %v157 = vadd.f32 %v148, %v155
    %v158 = vadd.f32 %v149, %v155
    %v159 = vld [vmem:[%s3] sm:$0xff]
    %v160 = vld [vmem:[%s3 + $0x8] sm:$0xff]
    %v161 = vadd.f32 %v157, %v159
    %v162 = vadd.f32 %v158, %v160
    %163 = vst.msk [vmem:[%s4] sm:$0xff] %vm142, %v161
    %164 = vst.msk [vmem:[%s4 + $0x8] sm:$0xff] %vm142, %v162
  $region25: #{transformer_forward.14} parent=0 // pred_fallthru
    _
  // Predicated region
  $region26: #{transformer_forward.14} parent=0 // pred_check
    _
  $region27: #{transformer_forward.14} parent=0 // pred_check_branch
    %166 = sbr.rel (0) target = $region29
  $region28: #{transformer_forward.14} parent=0 // pred_region
    _
  $region29: #{transformer_forward.14} parent=0 // pred_fallthru
    _
  // Predicated region
  $region30: #{transformer_forward.14} parent=0 // pred_check
    _
  $region31: #{transformer_forward.14} parent=0 // pred_check_branch
    %168 = sbr.rel (0) target = $region33
  $region32: #{transformer_forward.14} parent=0 // pred_region
    _
  $region33: #{transformer_forward.14} parent=0 // pred_fallthru
    _

</llo_original>
